<compile_context>
chip_gen: v7x
topology: tpu7x:2x2x1
jax: 0.10.0
libtpu: 0.0.40
codegen_flags: <defaults>
</compile_context>

<pallas_src>
import jax
import jax.numpy as jnp
from jax import lax
from jax.experimental import pallas as pl
from jax.experimental.pallas import tpu as pltpu  # noqa: F401  (TPU backend)


# ---------------------------------------------------------------------------
# Fused kernel
# ---------------------------------------------------------------------------
def _net3_fused_kernel(
    # graph data
    x_ref, ea_ref, u_ref, send_c_ref, recv_c_ref, recv_r_ref,
    # gn1 edge block (split weights + bias)
    w_ee_ref, w_es_ref, w_er_ref, w_eu_ref, b_e_ref,
    # gn1 node block
    w_nn_ref, w_na_ref, w_nu_ref, b_n_ref,
    # gn1 global block
    w_gn_ref, w_ge_ref, w_gu_ref, b_g_ref,
    # gn2 edge decoder layer 1
    w_de_ref, w_ds_ref, w_dr_ref, w_du_ref, b_d_ref,
    # gn2 edge decoder layer 2
    w_o_ref, b_o_ref,
    # output
    out_ref,
):
    f32 = jnp.float32

    def dot(a, b):
        return jnp.dot(a, b, preferred_element_type=f32)

    x = x_ref[...]            # (N, F_node)
    ea = ea_ref[...]          # (E, F_edge)
    u = u_ref[...]            # (1, G)
    N = x.shape[0]
    E = ea.shape[0]

    # -- gather / scatter one-hot matrices built in VMEM (no HBM one-hot) ---
    lane_n = lax.broadcasted_iota(jnp.int32, (E, N), 1)          # node id per lane
    send_oh = (lane_n == send_c_ref[...]).astype(f32)            # (E, N): gather by sender
    recv_oh = (lane_n == recv_c_ref[...]).astype(f32)            # (E, N): gather by receiver
    sub_n = lax.broadcasted_iota(jnp.int32, (N, E), 0)           # node id per sublane
    recv_oh_t = (sub_n == recv_r_ref[...]).astype(f32)           # (N, E): scatter_add matrix

    x_s = dot(send_oh, x)     # (E, F_node)  == x[senders]
    x_r = dot(recv_oh, x)     # (E, F_node)  == x[receivers]

    # -- gn1 EdgeBlock: relu([edge | x_s | x_r | u] @ W_eb + b_eb) ----------
    e1 = (dot(ea, w_ee_ref[...]) + dot(x_s, w_es_ref[...])
          + dot(x_r, w_er_ref[...]) + dot(u, w_eu_ref[...]) + b_e_ref[...])
    e1 = jnp.maximum(e1, 0.0)                                    # (E, He)

    # -- gn1 NodeBlock: scatter_add of received edges, relu(Linear) ---------
    agg_recv = dot(recv_oh_t, e1)                                # (N, He)
    n1 = (dot(x, w_nn_ref[...]) + dot(agg_recv, w_na_ref[...])
          + dot(u, w_nu_ref[...]) + b_n_ref[...])
    n1 = jnp.maximum(n1, 0.0)                                    # (N, Hn)

    # -- gn1 GlobalBlock: scatter_mean == column mean (single graph) --------
    node_mean = jnp.mean(n1, axis=0, keepdims=True)              # (1, Hn)
    edge_mean = jnp.mean(e1, axis=0, keepdims=True)              # (1, He)
    u1 = (dot(node_mean, w_gn_ref[...]) + dot(edge_mean, w_ge_ref[...])
          + dot(u, w_gu_ref[...]) + b_g_ref[...])
    u1 = jnp.maximum(u1, 0.0)                                    # (1, G)

    # -- gn2 edge decoder: project n1 over N rows, THEN gather over E -------
    n_sp = dot(n1, w_ds_ref[...])                                # (N, Hd)
    n_rp = dot(n1, w_dr_ref[...])                                # (N, Hd)
    h = (dot(e1, w_de_ref[...]) + dot(send_oh, n_sp) + dot(recv_oh, n_rp)
         + dot(u1, w_du_ref[...]) + b_d_ref[...])
    h = jnp.maximum(h, 0.0)                                      # (E, Hd)

    e_out = dot(h, w_o_ref[...]) + b_o_ref[...]                  # (E, out_dim)

    # -- final residual: ret = e_out * x[recv, 2:3] - x[send, 2:3] ----------
    out_ref[...] = (e_out * x_r[:, 2:3] - x_s[:, 2:3]).astype(out_ref.dtype)


def _full_spec(a):
    return pl.BlockSpec(a.shape, lambda: (0,) * a.ndim)


# ---------------------------------------------------------------------------
# Parameter initialization (deterministic, PyTorch-Linear-like uniform init)
# ---------------------------------------------------------------------------
def init_params(key, node_in, edge_in, out_dim, edge_h, node_h, global_h):
    def lin(k, fan_in, fan_out):
        k1, k2 = jax.random.split(k)
        lim = 1.0 / jnp.sqrt(jnp.float32(fan_in))
        w = jax.random.uniform(k1, (fan_in, fan_out), jnp.float32, -lim, lim)
        b = jax.random.uniform(k2, (fan_out,), jnp.float32, -lim, lim)
        return w, b

    keys = jax.random.split(key, 5)
    p = {}
    # gn1 edge block:  Linear(edge_in + 2*node_in + global_h -> edge_h), ReLU
    p["eb_w"], p["eb_b"] = lin(keys[0], edge_in + 2 * node_in + global_h, edge_h)
    # gn1 node block:  Linear(node_in + edge_h + global_h -> node_h), ReLU
    p["nb_w"], p["nb_b"] = lin(keys[1], node_in + edge_h + global_h, node_h)
    # gn1 global block: Linear(node_h + edge_h + global_h -> global_h), ReLU
    p["gb_w"], p["gb_b"] = lin(keys[2], node_h + edge_h + global_h, global_h)
    # gn2 edge decoder: Linear(edge_h + 2*node_h + global_h -> edge_h), ReLU,
    #                   Linear(edge_h -> out_dim)
    p["dec1_w"], p["dec1_b"] = lin(keys[3], edge_h + 2 * node_h + global_h, edge_h)
    p["dec2_w"], p["dec2_b"] = lin(keys[4], edge_h, out_dim)
    return p


# ---------------------------------------------------------------------------
# Net3 forward (single graph: x, edge_index, edge_attr, global_attr)
# ---------------------------------------------------------------------------
def net3_forward(params, x, edge_index, edge_attr, u):
    N, node_in = x.shape
    E, edge_in = edge_attr.shape
    global_h = u.shape[1]
    edge_h = params["eb_w"].shape[1]
    node_h = params["nb_w"].shape[1]
    out_dim = params["dec2_w"].shape[1]

    senders = edge_index[0].astype(jnp.int32)
    receivers = edge_index[1].astype(jnp.int32)
    send_col = senders.reshape(E, 1)
    recv_col = receivers.reshape(E, 1)
    recv_row = receivers.reshape(1, E)

    # Split each block-Linear weight into row blocks matching the concat order
    #   eb_in  = [edge, x[send], x[recv], u]
    #   nb_in  = [x, agg_recv, u]
    #   gb_in  = [node_mean, edge_mean, u]
    #   dec_in = [e1, n1[send], n1[recv], u1]
    # TODO(synk): exact concat order inside EdgeBlock/NodeBlock/GlobalBlock
    # comes from the external blocks.py; with synthetic weights any order is a
    # row permutation of the same Linear.
    eb_w = params["eb_w"]
    w_ee = eb_w[:edge_in]
    w_es = eb_w[edge_in:edge_in + node_in]
    w_er = eb_w[edge_in + node_in:edge_in + 2 * node_in]
    w_eu = eb_w[edge_in + 2 * node_in:]

    nb_w = params["nb_w"]
    w_nn = nb_w[:node_in]
    w_na = nb_w[node_in:node_in + edge_h]
    w_nu = nb_w[node_in + edge_h:]

    gb_w = params["gb_w"]
    w_gn = gb_w[:node_h]
    w_ge = gb_w[node_h:node_h + edge_h]
    w_gu = gb_w[node_h + edge_h:]

    d1_w = params["dec1_w"]
    w_de = d1_w[:edge_h]
    w_ds = d1_w[edge_h:edge_h + node_h]
    w_dr = d1_w[edge_h + node_h:edge_h + 2 * node_h]
    w_du = d1_w[edge_h + 2 * node_h:]

    args = (
        x, edge_attr, u, send_col, recv_col, recv_row,
        w_ee, w_es, w_er, w_eu, params["eb_b"].reshape(1, edge_h),
        w_nn, w_na, w_nu, params["nb_b"].reshape(1, node_h),
        w_gn, w_ge, w_gu, params["gb_b"].reshape(1, global_h),
        w_de, w_ds, w_dr, w_du, params["dec1_b"].reshape(1, edge_h),
        params["dec2_w"], params["dec2_b"].reshape(1, out_dim),
    )

    return pl.pallas_call(
        _net3_fused_kernel,
        out_shape=jax.ShapeDtypeStruct((E, out_dim), jnp.float32),
        in_specs=[_full_spec(a) for a in args],
        out_specs=pl.BlockSpec((E, out_dim), lambda: (0, 0)),
    )(*args)


# ---------------------------------------------------------------------------
if __name__ == "__main__":
    # Small, forward-consistent shapes (module defaults use 64-wide hiddens).
    node_in, edge_in, out_dim = 4, 3, 2          # node_attr_size >= 3 (uses x[:, 2:3])
    edge_h = node_h = global_h = 64
    N, E = 10, 16

    key = jax.random.PRNGKey(0)
    k_param, kx, ke, ku, ki = jax.random.split(key, 5)

    params = init_params(k_param, node_in, edge_in, out_dim, edge_h, node_h, global_h)

    x = jax.random.normal(kx, (N, node_in), jnp.float32)          # node attrs
    edge_attr = jax.random.normal(ke, (E, edge_in), jnp.float32)  # edge attrs
    u = jax.random.normal(ku, (1, global_h), jnp.float32)         # graph global attr
    edge_index = jax.random.randint(ki, (2, E), 0, N)             # [senders; receivers]

    fwd = jax.jit(net3_forward)
    ret = fwd(params, x, edge_index, edge_attr, u)
    ret = jax.block_until_ready(ret)

    assert ret.shape == (E, out_dim), ret.shape
    assert ret.dtype == jnp.float32
    assert bool(jnp.all(jnp.isfinite(ret)))
    print("KERNEL_OK")
</pallas_src>

<mosaic_0001>
module attributes {stable_mosaic.version = 11 : i64} {
  func.func @_net3_fused_kernel(%arg0: memref<10x4xf32, #tpu.memory_space<vmem>>, %arg1: memref<16x3xf32, #tpu.memory_space<vmem>>, %arg2: memref<1x64xf32, #tpu.memory_space<vmem>>, %arg3: memref<16x1xi32, #tpu.memory_space<vmem>>, %arg4: memref<16x1xi32, #tpu.memory_space<vmem>>, %arg5: memref<1x16xi32, #tpu.memory_space<vmem>>, %arg6: memref<3x64xf32, #tpu.memory_space<vmem>>, %arg7: memref<4x64xf32, #tpu.memory_space<vmem>>, %arg8: memref<4x64xf32, #tpu.memory_space<vmem>>, %arg9: memref<64x64xf32, #tpu.memory_space<vmem>>, %arg10: memref<1x64xf32, #tpu.memory_space<vmem>>, %arg11: memref<4x64xf32, #tpu.memory_space<vmem>>, %arg12: memref<64x64xf32, #tpu.memory_space<vmem>>, %arg13: memref<64x64xf32, #tpu.memory_space<vmem>>, %arg14: memref<1x64xf32, #tpu.memory_space<vmem>>, %arg15: memref<64x64xf32, #tpu.memory_space<vmem>>, %arg16: memref<64x64xf32, #tpu.memory_space<vmem>>, %arg17: memref<64x64xf32, #tpu.memory_space<vmem>>, %arg18: memref<1x64xf32, #tpu.memory_space<vmem>>, %arg19: memref<64x64xf32, #tpu.memory_space<vmem>>, %arg20: memref<64x64xf32, #tpu.memory_space<vmem>>, %arg21: memref<64x64xf32, #tpu.memory_space<vmem>>, %arg22: memref<64x64xf32, #tpu.memory_space<vmem>>, %arg23: memref<1x64xf32, #tpu.memory_space<vmem>>, %arg24: memref<64x2xf32, #tpu.memory_space<vmem>>, %arg25: memref<1x2xf32, #tpu.memory_space<vmem>>, %arg26: memref<16x2xf32, #tpu.memory_space<vmem>>) attributes {dimension_semantics = [], scalar_prefetch = 0 : i64, scratch_operands = 0 : i64, tpu.core_type = #tpu.core_type<tc>} {
    %c0 = arith.constant 0 : index
    %c0_0 = arith.constant 0 : index
    %0 = vector.load %arg0[%c0, %c0_0] : memref<10x4xf32, #tpu.memory_space<vmem>>, vector<10x4xf32>
    %c0_1 = arith.constant 0 : index
    %c0_2 = arith.constant 0 : index
    %1 = vector.load %arg1[%c0_1, %c0_2] : memref<16x3xf32, #tpu.memory_space<vmem>>, vector<16x3xf32>
    %c0_3 = arith.constant 0 : index
    %c0_4 = arith.constant 0 : index
    %2 = vector.load %arg2[%c0_3, %c0_4] : memref<1x64xf32, #tpu.memory_space<vmem>>, vector<1x64xf32>
    %3 = tpu.iota {dimensions = array<i32: 1>} : vector<16x10xi32>
    %c0_5 = arith.constant 0 : index
    %c0_6 = arith.constant 0 : index
    %4 = vector.load %arg3[%c0_5, %c0_6] : memref<16x1xi32, #tpu.memory_space<vmem>>, vector<16x1xi32>
    %5 = vector.broadcast %4 : vector<16x1xi32> to vector<16x10xi32>
    %6 = arith.cmpi eq, %3, %5 : vector<16x10xi32>
    %7 = arith.extui %6 : vector<16x10xi1> to vector<16x10xi32>
    %8 = arith.sitofp %7 : vector<16x10xi32> to vector<16x10xf32>
    %c0_7 = arith.constant 0 : index
    %c0_8 = arith.constant 0 : index
    %9 = vector.load %arg4[%c0_7, %c0_8] : memref<16x1xi32, #tpu.memory_space<vmem>>, vector<16x1xi32>
    %10 = vector.broadcast %9 : vector<16x1xi32> to vector<16x10xi32>
    %11 = arith.cmpi eq, %3, %10 : vector<16x10xi32>
    %12 = arith.extui %11 : vector<16x10xi1> to vector<16x10xi32>
    %13 = arith.sitofp %12 : vector<16x10xi32> to vector<16x10xf32>
    %14 = tpu.iota {dimensions = array<i32: 0>} : vector<10x16xi32>
    %c0_9 = arith.constant 0 : index
    %c0_10 = arith.constant 0 : index
    %15 = vector.load %arg5[%c0_9, %c0_10] : memref<1x16xi32, #tpu.memory_space<vmem>>, vector<1x16xi32>
    %16 = vector.broadcast %15 : vector<1x16xi32> to vector<10x16xi32>
    %17 = arith.cmpi eq, %14, %16 : vector<10x16xi32>
    %18 = arith.extui %17 : vector<10x16xi1> to vector<10x16xi32>
    %19 = arith.sitofp %18 : vector<10x16xi32> to vector<10x16xf32>
    %cst = arith.constant dense<0.000000e+00> : vector<16x4xf32>
    %20 = tpu.matmul %8, %0, %cst {dimension_numbers = #tpu.dot_dimension_numbers<[1], [0], [0], [1], [0, 0, 1, 1], [], []>} : vector<16x10xf32>, vector<10x4xf32>, vector<16x4xf32> -> vector<16x4xf32>
    %cst_11 = arith.constant dense<0.000000e+00> : vector<16x4xf32>
    %21 = tpu.matmul %13, %0, %cst_11 {dimension_numbers = #tpu.dot_dimension_numbers<[1], [0], [0], [1], [0, 0, 1, 1], [], []>} : vector<16x10xf32>, vector<10x4xf32>, vector<16x4xf32> -> vector<16x4xf32>
    %c0_12 = arith.constant 0 : index
    %c0_13 = arith.constant 0 : index
    %22 = vector.load %arg6[%c0_12, %c0_13] : memref<3x64xf32, #tpu.memory_space<vmem>>, vector<3x64xf32>
    %cst_14 = arith.constant dense<0.000000e+00> : vector<16x64xf32>
    %23 = tpu.matmul %1, %22, %cst_14 {dimension_numbers = #tpu.dot_dimension_numbers<[1], [0], [0], [1], [0, 0, 1, 1], [], []>} : vector<16x3xf32>, vector<3x64xf32>, vector<16x64xf32> -> vector<16x64xf32>
    %c0_15 = arith.constant 0 : index
    %c0_16 = arith.constant 0 : index
    %24 = vector.load %arg7[%c0_15, %c0_16] : memref<4x64xf32, #tpu.memory_space<vmem>>, vector<4x64xf32>
    %cst_17 = arith.constant dense<0.000000e+00> : vector<16x64xf32>
    %25 = tpu.matmul %20, %24, %cst_17 {dimension_numbers = #tpu.dot_dimension_numbers<[1], [0], [0], [1], [0, 0, 1, 1], [], []>} : vector<16x4xf32>, vector<4x64xf32>, vector<16x64xf32> -> vector<16x64xf32>
    %26 = arith.addf %23, %25 : vector<16x64xf32>
    %c0_18 = arith.constant 0 : index
    %c0_19 = arith.constant 0 : index
    %27 = vector.load %arg8[%c0_18, %c0_19] : memref<4x64xf32, #tpu.memory_space<vmem>>, vector<4x64xf32>
    %cst_20 = arith.constant dense<0.000000e+00> : vector<16x64xf32>
    %28 = tpu.matmul %21, %27, %cst_20 {dimension_numbers = #tpu.dot_dimension_numbers<[1], [0], [0], [1], [0, 0, 1, 1], [], []>} : vector<16x4xf32>, vector<4x64xf32>, vector<16x64xf32> -> vector<16x64xf32>
    %29 = arith.addf %26, %28 : vector<16x64xf32>
    %c0_21 = arith.constant 0 : index
    %c0_22 = arith.constant 0 : index
    %30 = vector.load %arg9[%c0_21, %c0_22] : memref<64x64xf32, #tpu.memory_space<vmem>>, vector<64x64xf32>
    %cst_23 = arith.constant dense<0.000000e+00> : vector<1x64xf32>
    %31 = tpu.matmul %2, %30, %cst_23 {dimension_numbers = #tpu.dot_dimension_numbers<[1], [0], [0], [1], [0, 0, 1, 1], [], []>} : vector<1x64xf32>, vector<64x64xf32>, vector<1x64xf32> -> vector<1x64xf32>
    %32 = vector.broadcast %31 : vector<1x64xf32> to vector<16x64xf32>
    %33 = arith.addf %29, %32 : vector<16x64xf32>
    %c0_24 = arith.constant 0 : index
    %c0_25 = arith.constant 0 : index
    %34 = vector.load %arg10[%c0_24, %c0_25] : memref<1x64xf32, #tpu.memory_space<vmem>>, vector<1x64xf32>
    %35 = vector.broadcast %34 : vector<1x64xf32> to vector<16x64xf32>
    %36 = arith.addf %33, %35 : vector<16x64xf32>
    %cst_26 = arith.constant 0.000000e+00 : f32
    %37 = vector.broadcast %cst_26 : f32 to vector<16x64xf32>
    %38 = arith.maximumf %36, %37 : vector<16x64xf32>
    %cst_27 = arith.constant dense<0.000000e+00> : vector<10x64xf32>
    %39 = tpu.matmul %19, %38, %cst_27 {dimension_numbers = #tpu.dot_dimension_numbers<[1], [0], [0], [1], [0, 0, 1, 1], [], []>} : vector<10x16xf32>, vector<16x64xf32>, vector<10x64xf32> -> vector<10x64xf32>
    %c0_28 = arith.constant 0 : index
    %c0_29 = arith.constant 0 : index
    %40 = vector.load %arg11[%c0_28, %c0_29] : memref<4x64xf32, #tpu.memory_space<vmem>>, vector<4x64xf32>
    %cst_30 = arith.constant dense<0.000000e+00> : vector<10x64xf32>
    %41 = tpu.matmul %0, %40, %cst_30 {dimension_numbers = #tpu.dot_dimension_numbers<[1], [0], [0], [1], [0, 0, 1, 1], [], []>} : vector<10x4xf32>, vector<4x64xf32>, vector<10x64xf32> -> vector<10x64xf32>
    %c0_31 = arith.constant 0 : index
    %c0_32 = arith.constant 0 : index
    %42 = vector.load %arg12[%c0_31, %c0_32] : memref<64x64xf32, #tpu.memory_space<vmem>>, vector<64x64xf32>
    %cst_33 = arith.constant dense<0.000000e+00> : vector<10x64xf32>
    %43 = tpu.matmul %39, %42, %cst_33 {dimension_numbers = #tpu.dot_dimension_numbers<[1], [0], [0], [1], [0, 0, 1, 1], [], []>} : vector<10x64xf32>, vector<64x64xf32>, vector<10x64xf32> -> vector<10x64xf32>
    %44 = arith.addf %41, %43 : vector<10x64xf32>
    %c0_34 = arith.constant 0 : index
    %c0_35 = arith.constant 0 : index
    %45 = vector.load %arg13[%c0_34, %c0_35] : memref<64x64xf32, #tpu.memory_space<vmem>>, vector<64x64xf32>
    %cst_36 = arith.constant dense<0.000000e+00> : vector<1x64xf32>
    %46 = tpu.matmul %2, %45, %cst_36 {dimension_numbers = #tpu.dot_dimension_numbers<[1], [0], [0], [1], [0, 0, 1, 1], [], []>} : vector<1x64xf32>, vector<64x64xf32>, vector<1x64xf32> -> vector<1x64xf32>
    %47 = vector.broadcast %46 : vector<1x64xf32> to vector<10x64xf32>
    %48 = arith.addf %44, %47 : vector<10x64xf32>
    %c0_37 = arith.constant 0 : index
    %c0_38 = arith.constant 0 : index
    %49 = vector.load %arg14[%c0_37, %c0_38] : memref<1x64xf32, #tpu.memory_space<vmem>>, vector<1x64xf32>
    %50 = vector.broadcast %49 : vector<1x64xf32> to vector<10x64xf32>
    %51 = arith.addf %48, %50 : vector<10x64xf32>
    %cst_39 = arith.constant 0.000000e+00 : f32
    %52 = vector.broadcast %cst_39 : f32 to vector<10x64xf32>
    %53 = arith.maximumf %51, %52 : vector<10x64xf32>
    %cst_40 = arith.constant dense<0.000000e+00> : vector<64xf32>
    %54 = vector.multi_reduction <add>, %53, %cst_40 [0] : vector<10x64xf32> to vector<64xf32>
    %55 = vector.shape_cast %54 : vector<64xf32> to vector<1x64xf32>
    %cst_41 = arith.constant 1.000000e+01 : f32
    %56 = vector.broadcast %cst_41 : f32 to vector<1x64xf32>
    %57 = arith.divf %55, %56 : vector<1x64xf32>
    %cst_42 = arith.constant dense<0.000000e+00> : vector<64xf32>
    %58 = vector.multi_reduction <add>, %38, %cst_42 [0] : vector<16x64xf32> to vector<64xf32>
    %59 = vector.shape_cast %58 : vector<64xf32> to vector<1x64xf32>
    %cst_43 = arith.constant 1.600000e+01 : f32
    %60 = vector.broadcast %cst_43 : f32 to vector<1x64xf32>
    %61 = arith.divf %59, %60 : vector<1x64xf32>
    %c0_44 = arith.constant 0 : index
    %c0_45 = arith.constant 0 : index
    %62 = vector.load %arg15[%c0_44, %c0_45] : memref<64x64xf32, #tpu.memory_space<vmem>>, vector<64x64xf32>
    %cst_46 = arith.constant dense<0.000000e+00> : vector<1x64xf32>
    %63 = tpu.matmul %57, %62, %cst_46 {dimension_numbers = #tpu.dot_dimension_numbers<[1], [0], [0], [1], [0, 0, 1, 1], [], []>} : vector<1x64xf32>, vector<64x64xf32>, vector<1x64xf32> -> vector<1x64xf32>
    %c0_47 = arith.constant 0 : index
    %c0_48 = arith.constant 0 : index
    %64 = vector.load %arg16[%c0_47, %c0_48] : memref<64x64xf32, #tpu.memory_space<vmem>>, vector<64x64xf32>
    %cst_49 = arith.constant dense<0.000000e+00> : vector<1x64xf32>
    %65 = tpu.matmul %61, %64, %cst_49 {dimension_numbers = #tpu.dot_dimension_numbers<[1], [0], [0], [1], [0, 0, 1, 1], [], []>} : vector<1x64xf32>, vector<64x64xf32>, vector<1x64xf32> -> vector<1x64xf32>
    %66 = arith.addf %63, %65 : vector<1x64xf32>
    %c0_50 = arith.constant 0 : index
    %c0_51 = arith.constant 0 : index
    %67 = vector.load %arg17[%c0_50, %c0_51] : memref<64x64xf32, #tpu.memory_space<vmem>>, vector<64x64xf32>
    %cst_52 = arith.constant dense<0.000000e+00> : vector<1x64xf32>
    %68 = tpu.matmul %2, %67, %cst_52 {dimension_numbers = #tpu.dot_dimension_numbers<[1], [0], [0], [1], [0, 0, 1, 1], [], []>} : vector<1x64xf32>, vector<64x64xf32>, vector<1x64xf32> -> vector<1x64xf32>
    %69 = arith.addf %66, %68 : vector<1x64xf32>
    %c0_53 = arith.constant 0 : index
    %c0_54 = arith.constant 0 : index
    %70 = vector.load %arg18[%c0_53, %c0_54] : memref<1x64xf32, #tpu.memory_space<vmem>>, vector<1x64xf32>
    %71 = arith.addf %69, %70 : vector<1x64xf32>
    %cst_55 = arith.constant 0.000000e+00 : f32
    %72 = vector.broadcast %cst_55 : f32 to vector<1x64xf32>
    %73 = arith.maximumf %71, %72 : vector<1x64xf32>
    %c0_56 = arith.constant 0 : index
    %c0_57 = arith.constant 0 : index
    %74 = vector.load %arg20[%c0_56, %c0_57] : memref<64x64xf32, #tpu.memory_space<vmem>>, vector<64x64xf32>
    %cst_58 = arith.constant dense<0.000000e+00> : vector<10x64xf32>
    %75 = tpu.matmul %53, %74, %cst_58 {dimension_numbers = #tpu.dot_dimension_numbers<[1], [0], [0], [1], [0, 0, 1, 1], [], []>} : vector<10x64xf32>, vector<64x64xf32>, vector<10x64xf32> -> vector<10x64xf32>
    %c0_59 = arith.constant 0 : index
    %c0_60 = arith.constant 0 : index
    %76 = vector.load %arg21[%c0_59, %c0_60] : memref<64x64xf32, #tpu.memory_space<vmem>>, vector<64x64xf32>
    %cst_61 = arith.constant dense<0.000000e+00> : vector<10x64xf32>
    %77 = tpu.matmul %53, %76, %cst_61 {dimension_numbers = #tpu.dot_dimension_numbers<[1], [0], [0], [1], [0, 0, 1, 1], [], []>} : vector<10x64xf32>, vector<64x64xf32>, vector<10x64xf32> -> vector<10x64xf32>
    %c0_62 = arith.constant 0 : index
    %c0_63 = arith.constant 0 : index
    %78 = vector.load %arg19[%c0_62, %c0_63] : memref<64x64xf32, #tpu.memory_space<vmem>>, vector<64x64xf32>
    %cst_64 = arith.constant dense<0.000000e+00> : vector<16x64xf32>
    %79 = tpu.matmul %38, %78, %cst_64 {dimension_numbers = #tpu.dot_dimension_numbers<[1], [0], [0], [1], [0, 0, 1, 1], [], []>} : vector<16x64xf32>, vector<64x64xf32>, vector<16x64xf32> -> vector<16x64xf32>
    %cst_65 = arith.constant dense<0.000000e+00> : vector<16x64xf32>
    %80 = tpu.matmul %8, %75, %cst_65 {dimension_numbers = #tpu.dot_dimension_numbers<[1], [0], [0], [1], [0, 0, 1, 1], [], []>} : vector<16x10xf32>, vector<10x64xf32>, vector<16x64xf32> -> vector<16x64xf32>
    %81 = arith.addf %79, %80 : vector<16x64xf32>
    %cst_66 = arith.constant dense<0.000000e+00> : vector<16x64xf32>
    %82 = tpu.matmul %13, %77, %cst_66 {dimension_numbers = #tpu.dot_dimension_numbers<[1], [0], [0], [1], [0, 0, 1, 1], [], []>} : vector<16x10xf32>, vector<10x64xf32>, vector<16x64xf32> -> vector<16x64xf32>
    %83 = arith.addf %81, %82 : vector<16x64xf32>
    %c0_67 = arith.constant 0 : index
    %c0_68 = arith.constant 0 : index
    %84 = vector.load %arg22[%c0_67, %c0_68] : memref<64x64xf32, #tpu.memory_space<vmem>>, vector<64x64xf32>
    %cst_69 = arith.constant dense<0.000000e+00> : vector<1x64xf32>
    %85 = tpu.matmul %73, %84, %cst_69 {dimension_numbers = #tpu.dot_dimension_numbers<[1], [0], [0], [1], [0, 0, 1, 1], [], []>} : vector<1x64xf32>, vector<64x64xf32>, vector<1x64xf32> -> vector<1x64xf32>
    %86 = vector.broadcast %85 : vector<1x64xf32> to vector<16x64xf32>
    %87 = arith.addf %83, %86 : vector<16x64xf32>
    %c0_70 = arith.constant 0 : index
    %c0_71 = arith.constant 0 : index
    %88 = vector.load %arg23[%c0_70, %c0_71] : memref<1x64xf32, #tpu.memory_space<vmem>>, vector<1x64xf32>
    %89 = vector.broadcast %88 : vector<1x64xf32> to vector<16x64xf32>
    %90 = arith.addf %87, %89 : vector<16x64xf32>
    %cst_72 = arith.constant 0.000000e+00 : f32
    %91 = vector.broadcast %cst_72 : f32 to vector<16x64xf32>
    %92 = arith.maximumf %90, %91 : vector<16x64xf32>
    %c0_73 = arith.constant 0 : index
    %c0_74 = arith.constant 0 : index
    %93 = vector.load %arg24[%c0_73, %c0_74] : memref<64x2xf32, #tpu.memory_space<vmem>>, vector<64x2xf32>
    %cst_75 = arith.constant dense<0.000000e+00> : vector<16x2xf32>
    %94 = tpu.matmul %92, %93, %cst_75 {dimension_numbers = #tpu.dot_dimension_numbers<[1], [0], [0], [1], [0, 0, 1, 1], [], []>} : vector<16x64xf32>, vector<64x2xf32>, vector<16x2xf32> -> vector<16x2xf32>
    %c0_76 = arith.constant 0 : index
    %c0_77 = arith.constant 0 : index
    %95 = vector.load %arg25[%c0_76, %c0_77] : memref<1x2xf32, #tpu.memory_space<vmem>>, vector<1x2xf32>
    %96 = vector.broadcast %95 : vector<1x2xf32> to vector<16x2xf32>
    %97 = arith.addf %94, %96 : vector<16x2xf32>
    %98 = vector.extract_strided_slice %21 {offsets = [0, 2], sizes = [16, 1], strides = [1, 1]} : vector<16x4xf32> to vector<16x1xf32>
    %99 = vector.broadcast %98 : vector<16x1xf32> to vector<16x2xf32>
    %100 = arith.mulf %97, %99 : vector<16x2xf32>
    %101 = vector.extract_strided_slice %20 {offsets = [0, 2], sizes = [16, 1], strides = [1, 1]} : vector<16x4xf32> to vector<16x1xf32>
    %102 = vector.broadcast %101 : vector<16x1xf32> to vector<16x2xf32>
    %103 = arith.subf %100, %102 : vector<16x2xf32>
    %c0_78 = arith.constant 0 : index
    %c0_79 = arith.constant 0 : index
    %104 = vector.load %arg26[%c0_78, %c0_79] : memref<16x2xf32, #tpu.memory_space<vmem>>, vector<16x2xf32>
    tpu.vector_store %arg26[%c0_78, %c0_79], %103 {strides = array<i32>} : memref<16x2xf32, #tpu.memory_space<vmem>>, vector<16x2xf32>,
    return
  }
}

</mosaic_0001>

<llo_original>
// kernel: net3_forward.1
$region0: #{net3_forward.1}
  #allocation0 [shape = 'u32[]', space=smem, size = 0x4, offset = 0x4, fixed_abs, tag = 'smem constant byte address 0x4 - core index']
  #allocation1 [shape = 'u32[144,128]{1,0:T(1,128)}', space=vmem, size = 0x12000, scoped, tag = 'internal scratch']
  %s0 = inlined_call_operand.vmem [shape: f32[10,4], index: 0, kind: input, shape index: {}]
  %s1 = inlined_call_operand.vmem [shape: f32[16,3], index: 1, kind: input, shape index: {}]
  %s2 = inlined_call_operand.vmem [shape: f32[1,64], index: 2, kind: input, shape index: {}]
  %s3 = inlined_call_operand.vmem [shape: s32[16,1], index: 3, kind: input, shape index: {}]
  %s4 = inlined_call_operand.vmem [shape: s32[16,1], index: 4, kind: input, shape index: {}]
  %s5 = inlined_call_operand.vmem [shape: s32[1,16], index: 5, kind: input, shape index: {}]
  %s6 = inlined_call_operand.vmem [shape: f32[3,64], index: 6, kind: input, shape index: {}]
  %s7 = inlined_call_operand.vmem [shape: f32[4,64], index: 7, kind: input, shape index: {}]
  %s8 = inlined_call_operand.vmem [shape: f32[4,64], index: 8, kind: input, shape index: {}]
  %s9 = inlined_call_operand.vmem [shape: f32[64,64], index: 9, kind: input, shape index: {}]
  %s10 = inlined_call_operand.vmem [shape: f32[1,64], index: 10, kind: input, shape index: {}]
  %s11 = inlined_call_operand.vmem [shape: f32[4,64], index: 11, kind: input, shape index: {}]
  %s12 = inlined_call_operand.vmem [shape: f32[64,64], index: 12, kind: input, shape index: {}]
  %s13 = inlined_call_operand.vmem [shape: f32[64,64], index: 13, kind: input, shape index: {}]
  %s14 = inlined_call_operand.vmem [shape: f32[1,64], index: 14, kind: input, shape index: {}]
  %s15 = inlined_call_operand.vmem [shape: f32[64,64], index: 15, kind: input, shape index: {}]
  %s16 = inlined_call_operand.vmem [shape: f32[64,64], index: 16, kind: input, shape index: {}]
  %s17 = inlined_call_operand.vmem [shape: f32[64,64], index: 17, kind: input, shape index: {}]
  %s18 = inlined_call_operand.vmem [shape: f32[1,64], index: 18, kind: input, shape index: {}]
  %s19 = inlined_call_operand.vmem [shape: f32[64,64], index: 19, kind: input, shape index: {}]
  %s20 = inlined_call_operand.vmem [shape: f32[64,64], index: 20, kind: input, shape index: {}]
  %s21 = inlined_call_operand.vmem [shape: f32[64,64], index: 21, kind: input, shape index: {}]
  %s22 = inlined_call_operand.vmem [shape: f32[64,64], index: 22, kind: input, shape index: {}]
  %s23 = inlined_call_operand.vmem [shape: f32[1,64], index: 23, kind: input, shape index: {}]
  %s24 = inlined_call_operand.vmem [shape: f32[64,2], index: 24, kind: input, shape index: {}]
  %s25 = inlined_call_operand.vmem [shape: f32[1,2], index: 25, kind: input, shape index: {}]
  %s26 = inlined_call_operand.vmem [shape: f32[16,2], index: 26, kind: output, shape index: {}]
  %s27 = sld [smem:[#allocation0]]
  $region114: #{net3_forward.1} parent=0
    _
  %s29 = ssub.s32 1, %s27
  %s30 = scalar_select 0, %s29, %s27
  // Predicated region
  $region2: #{net3_forward.1} parent=0 // pred_check
    _
  $region3: #{net3_forward.1} parent=0 // pred_check_branch
    %32 = sbr.rel (0) target = $region5
  $region4: #{net3_forward.1} parent=0 // pred_region
    _
  $region5: #{net3_forward.1} parent=0 // pred_fallthru
    _
  // Predicated region
  $region6: #{net3_forward.1} parent=0 // pred_check
    _
  $region7: #{net3_forward.1} parent=0 // pred_check_branch
    %34 = sbr.rel (0) target = $region9
  $region8: #{net3_forward.1} parent=0 // pred_region
    _
  $region9: #{net3_forward.1} parent=0 // pred_fallthru
    _
  // Predicated region
  $region10: #{net3_forward.1} parent=0 // pred_check
    _
  $region11: #{net3_forward.1} parent=0 // pred_check_branch
    %36 = sbr.rel (0) target = $region13
  $region12: #{net3_forward.1} parent=0 // pred_region
    _
  $region13: #{net3_forward.1} parent=0 // pred_fallthru
    _
  // Predicated region
  $region14: #{net3_forward.1} parent=0 // pred_check
    _
  $region15: #{net3_forward.1} parent=0 // pred_check_branch
    %38 = sbr.rel (0) target = $region17
  $region16: #{net3_forward.1} parent=0 // pred_region
    _
  $region17: #{net3_forward.1} parent=0 // pred_fallthru
    _
  // Predicated region
  $region18: #{net3_forward.1} parent=0 // pred_check
    _
  $region19: #{net3_forward.1} parent=0 // pred_check_branch
    %40 = sbr.rel (0) target = $region21
  $region20: #{net3_forward.1} parent=0 // pred_region
    _
  $region21: #{net3_forward.1} parent=0 // pred_fallthru
    _
  // Predicated region
  $region22: #{net3_forward.1} parent=0 // pred_check
    _
  $region23: #{net3_forward.1} parent=0 // pred_check_branch
    %42 = sbr.rel (0) target = $region25
  $region24: #{net3_forward.1} parent=0 // pred_region
    _
  $region25: #{net3_forward.1} parent=0 // pred_fallthru
    _
  // Predicated region
  $region26: #{net3_forward.1} parent=0 // pred_check
    _
  $region27: #{net3_forward.1} parent=0 // pred_check_branch
    %44 = sbr.rel (0) target = $region29
  $region28: #{net3_forward.1} parent=0 // pred_region
    _
  $region29: #{net3_forward.1} parent=0 // pred_fallthru
    _
  // Predicated region
  $region30: #{net3_forward.1} parent=0 // pred_check
    _
  $region31: #{net3_forward.1} parent=0 // pred_check_branch
    %46 = sbr.rel (0) target = $region33
  $region32: #{net3_forward.1} parent=0 // pred_region
    _
  $region33: #{net3_forward.1} parent=0 // pred_fallthru
    _
  // Predicated region
  $region34: #{net3_forward.1} parent=0 // pred_check
    _
  $region35: #{net3_forward.1} parent=0 // pred_check_branch
    %48 = sbr.rel (0) target = $region37
  $region36: #{net3_forward.1} parent=0 // pred_region
    _
  $region37: #{net3_forward.1} parent=0 // pred_fallthru
    _
  // Predicated region
  $region38: #{net3_forward.1} parent=0 // pred_check
    _
  $region39: #{net3_forward.1} parent=0 // pred_check_branch
    %50 = sbr.rel (0) target = $region41
  $region40: #{net3_forward.1} parent=0 // pred_region
    _
  $region41: #{net3_forward.1} parent=0 // pred_fallthru
    _
  // Predicated region
  $region42: #{net3_forward.1} parent=0 // pred_check
    _
  $region43: #{net3_forward.1} parent=0 // pred_check_branch
    %52 = sbr.rel (0) target = $region45
  $region44: #{net3_forward.1} parent=0 // pred_region
    _
  $region45: #{net3_forward.1} parent=0 // pred_fallthru
    _
  // Predicated region
  $region46: #{net3_forward.1} parent=0 // pred_check
    _
  $region47: #{net3_forward.1} parent=0 // pred_check_branch
    %54 = sbr.rel (0) target = $region49
  $region48: #{net3_forward.1} parent=0 // pred_region
    _
  $region49: #{net3_forward.1} parent=0 // pred_fallthru
    _
  // Predicated region
  $region50: #{net3_forward.1} parent=0 // pred_check
    _
  $region51: #{net3_forward.1} parent=0 // pred_check_branch
    %56 = sbr.rel (0) target = $region53
  $region52: #{net3_forward.1} parent=0 // pred_region
    _
  $region53: #{net3_forward.1} parent=0 // pred_fallthru
    _
  // Predicated region
  $region54: #{net3_forward.1} parent=0 // pred_check
    _
  $region55: #{net3_forward.1} parent=0 // pred_check_branch
    %58 = sbr.rel (0) target = $region57
  $region56: #{net3_forward.1} parent=0 // pred_region
    _
  $region57: #{net3_forward.1} parent=0 // pred_fallthru
    _
  // Predicated region
  $region58: #{net3_forward.1} parent=0 // pred_check
    _
  $region59: #{net3_forward.1} parent=0 // pred_check_branch
    %60 = sbr.rel (0) target = $region61
  $region60: #{net3_forward.1} parent=0 // pred_region
    _
  $region61: #{net3_forward.1} parent=0 // pred_fallthru
    _
  // Predicated region
  $region62: #{net3_forward.1} parent=0 // pred_check
    _
  $region63: #{net3_forward.1} parent=0 // pred_check_branch
    %62 = sbr.rel (0) target = $region65
  $region64: #{net3_forward.1} parent=0 // pred_region
    _
  $region65: #{net3_forward.1} parent=0 // pred_fallthru
    _
  // Predicated region
  $region66: #{net3_forward.1} parent=0 // pred_check
    _
  $region67: #{net3_forward.1} parent=0 // pred_check_branch
    %64 = sbr.rel (0) target = $region69
  $region68: #{net3_forward.1} parent=0 // pred_region
    _
  $region69: #{net3_forward.1} parent=0 // pred_fallthru
    _
  // Predicated region
  $region70: #{net3_forward.1} parent=0 // pred_check
    _
  $region71: #{net3_forward.1} parent=0 // pred_check_branch
    %66 = sbr.rel (0) target = $region73
  $region72: #{net3_forward.1} parent=0 // pred_region
    _
  $region73: #{net3_forward.1} parent=0 // pred_fallthru
    _
  // Predicated region
  $region74: #{net3_forward.1} parent=0 // pred_check
    _
  $region75: #{net3_forward.1} parent=0 // pred_check_branch
    %68 = sbr.rel (0) target = $region77
  $region76: #{net3_forward.1} parent=0 // pred_region
    _
  $region77: #{net3_forward.1} parent=0 // pred_fallthru
    _
  // Predicated region
  $region78: #{net3_forward.1} parent=0 // pred_check
    _
  $region79: #{net3_forward.1} parent=0 // pred_check_branch
    %70 = sbr.rel (0) target = $region81
  $region80: #{net3_forward.1} parent=0 // pred_region
    _
  $region81: #{net3_forward.1} parent=0 // pred_fallthru
    _
  // Predicated region
  $region82: #{net3_forward.1} parent=0 // pred_check
    _
  $region83: #{net3_forward.1} parent=0 // pred_check_branch
    %72 = sbr.rel (0) target = $region85
  $region84: #{net3_forward.1} parent=0 // pred_region
    _
  $region85: #{net3_forward.1} parent=0 // pred_fallthru
    _
  // Predicated region
  $region86: #{net3_forward.1} parent=0 // pred_check
    _
  $region87: #{net3_forward.1} parent=0 // pred_check_branch
    %74 = sbr.rel (0) target = $region89
  $region88: #{net3_forward.1} parent=0 // pred_region
    _
  $region89: #{net3_forward.1} parent=0 // pred_fallthru
    _
  // Predicated region
  $region90: #{net3_forward.1} parent=0 // pred_check
    _
  $region91: #{net3_forward.1} parent=0 // pred_check_branch
    %76 = sbr.rel (0) target = $region93
  $region92: #{net3_forward.1} parent=0 // pred_region
    _
  $region93: #{net3_forward.1} parent=0 // pred_fallthru
    _
  // Predicated region
  $region94: #{net3_forward.1} parent=0 // pred_check
    _
  $region95: #{net3_forward.1} parent=0 // pred_check_branch
    %78 = sbr.rel (0) target = $region97
  $region96: #{net3_forward.1} parent=0 // pred_region
    _
  $region97: #{net3_forward.1} parent=0 // pred_fallthru
    _
  // Predicated region
  $region98: #{net3_forward.1} parent=0 // pred_check
    _
  $region99: #{net3_forward.1} parent=0 // pred_check_branch
    %80 = sbr.rel (0) target = $region101
  $region100: #{net3_forward.1} parent=0 // pred_region
    _
  $region101: #{net3_forward.1} parent=0 // pred_fallthru
    _
  // Predicated region
  $region102: #{net3_forward.1} parent=0 // pred_check
    _
  $region103: #{net3_forward.1} parent=0 // pred_check_branch
    %82 = sbr.rel (0) target = $region105
  $region104: #{net3_forward.1} parent=0 // pred_region
    _
  $region105: #{net3_forward.1} parent=0 // pred_fallthru
    _
  %v83 = vld [vmem:[%s0] sm:$0xff]
  %v84 = vld [vmem:[%s0 + $0x8] sm:$0x3]
  %v85 = vld [vmem:[%s1] sm:$0xff]
  %v86 = vld [vmem:[%s1 + $0x8] sm:$0xff]
  %v87 = vld [vmem:[%s2] sm:$0x1]
  %v88 = vlaneseq
  %v89 = vand.u32 %v88, 127
  %v90 = vld [vmem:[%s3] sm:$0xff]
  %v91 = vld [vmem:[%s3 + $0x8] sm:$0xff]
  %92 = vset.pattern.permute.xlu0 0
  %93 = vperm.xlu0 %92, %v90
  %v94 = vpop.permute.xlu0 %93
  %95 = vset.pattern.permute.xlu0 0
  %96 = vperm.xlu0 %95, %v91
  %v97 = vpop.permute.xlu0 %96
  %vm98 = vcmp.eq.s32.totalorder %v89, %v94
  %vm99 = vcmp.eq.s32.totalorder %v89, %v97
  %v100 = vsel %vm98, 1, 0
  %v101 = vsel %vm99, 1, 0
  %v102 = vcvt.s32.f32 %v100
  %v103 = vcvt.s32.f32 %v101
  %v104 = vld [vmem:[%s4] sm:$0xff]
  %v105 = vld [vmem:[%s4 + $0x8] sm:$0xff]
  %106 = vset.pattern.permute.xlu0 0
  %107 = vperm.xlu0 %106, %v104
  %v108 = vpop.permute.xlu0 %107
  %109 = vset.pattern.permute.xlu0 0
  %110 = vperm.xlu0 %109, %v105
  %v111 = vpop.permute.xlu0 %110
  %vm112 = vcmp.eq.s32.totalorder %v89, %v108
  %vm113 = vcmp.eq.s32.totalorder %v89, %v111
  %v114 = vsel %vm112, 1, 0
  %v115 = vsel %vm113, 1, 0
  %v116 = vcvt.s32.f32 %v114
  %v117 = vcvt.s32.f32 %v115
  %v118 = vlaneseq
  %v119 = vshrl.u32 %v118, 7
  %v120 = vadd.s32 %v119, 8
  %v121 = vld [vmem:[%s5] sm:$0x1]
  %v122 = vlaneseq
  %v123 = vshrl.u32 %v122, 7
  %v124 = vsub.s32 0, %v123
  %v125 = vrot.slane %v121, %v124
  %vm126 = vcmp.eq.s32.totalorder %v119, %v125
  %vm127 = vcmp.eq.s32.totalorder %v120, %v125
  %v128 = vsel %vm126, 1, 0
  %v129 = vsel %vm127, 1, 0
  %v130 = vcvt.s32.f32 %v128
  %v131 = vcvt.s32.f32 %v129
  %vm132 = vcmask 80896
  %v134 = vsel %vm132, %v102, 0
  %v137 = vsel %vm132, %v103, 0
  %vm139 = vcmask 1041408
  %v141 = vsel %vm139, %v84, 0
  %143 = vmatprep.subr.mxu0 0.0
  %144 = vmatpush1.msra.mxu0 %v83
  %145 = vmatprep.subr.mxu0 0.0
  %146 = vmatpush1.msra.mxu0 %v141
  %147 = vmatprep.subr.mxu0 0.0
  %148 = vmatpush1.msra.mxu0 0.0
  %149 = vmatprep.subr.mxu0 0.0
  %150 = vmatpush1.msra.mxu0 0.0
  %151 = vmatprep.subr.mxu0 0.0
  %152 = vmatpush1.msra.mxu0 0.0
  %153 = vmatprep.subr.mxu0 0.0
  %154 = vmatpush1.msra.mxu0 0.0
  %155 = vmatprep.subr.mxu0 0.0
  %156 = vmatpush1.msra.mxu0 0.0
  %157 = vmatprep.subr.mxu0 0.0
  %158 = vmatpush1.msra.mxu0 0.0
  %159 = vmatprep.subr.mxu0 0.0
  %160 = vmatpush1.msra.mxu0 0.0
  %161 = vmatprep.subr.mxu0 0.0
  %162 = vmatpush1.msra.mxu0 0.0
  %163 = vmatprep.subr.mxu0 0.0
  %164 = vmatpush1.msra.mxu0 0.0
  %165 = vmatprep.subr.mxu0 0.0
  %166 = vmatpush1.msra.mxu0 0.0
  %167 = vmatprep.subr.mxu0 0.0
  %168 = vmatpush1.msra.mxu0 0.0
  %169 = vmatprep.subr.mxu0 0.0
  %170 = vmatpush1.msra.mxu0 0.0
  %171 = vmatprep.subr.mxu0 0.0
  %172 = vmatpush1.msra.mxu0 0.0
  %173 = vmatprep.subr.mxu0 0.0
  %174 = vmatpush1.msra.mxu0 0.0
  %175 = vmatprep.subr.mxu0 0.0
  %176 = vmatpush1.msra.mxu0 0.0
  %177 = vmatprep.subr.mxu0 0.0
  %178 = vmatpush1.msra.mxu0 0.0
  %179 = vmatprep.subr.mxu0 0.0
  %180 = vmatpush1.msra.mxu0 0.0
  %181 = vmatprep.subr.mxu0 0.0
  %182 = vmatpush1.msra.mxu0 0.0
  %183 = vmatprep.subr.mxu0 0.0
  %184 = vmatpush1.msra.mxu0 0.0
  %185 = vmatprep.subr.mxu0 0.0
  %186 = vmatpush1.msra.mxu0 0.0
  %187 = vmatprep.subr.mxu0 0.0
  %188 = vmatpush1.msra.mxu0 0.0
  %189 = vmatprep.subr.mxu0 0.0
  %190 = vmatpush1.msra.mxu0 0.0
  %191 = vmatprep.subr.mxu0 0.0
  %192 = vmatpush1.msra.mxu0 0.0
  %193 = vmatprep.subr.mxu0 0.0
  %194 = vmatpush1.msra.mxu0 0.0
  %195 = vmatprep.subr.mxu0 0.0
  %196 = vmatpush1.msra.mxu0 0.0
  %197 = vmatprep.subr.mxu0 0.0
  %198 = vmatpush1.msra.mxu0 0.0
  %199 = vmatprep.subr.mxu0 0.0
  %200 = vmatpush1.msra.mxu0 0.0
  %201 = vmatprep.subr.mxu0 0.0
  %202 = vmatpush1.msra.mxu0 0.0
  %203 = vmatprep.subr.mxu0 0.0
  %204 = vmatpush1.msra.mxu0 0.0
  %205 = vmatprep.subr.mxu0 0.0
  %206 = vmatpush1.msra.mxu0 0.0
  %207 = vmatprep.mubr.f32.mxu0 0.0
  %208 = vmatmul.mubr.f32.gmra.mrb[0].mxu0 %v134
  %v209 = vpop.f32.mrb[0].mxu0
  %v210 = vadd.f32 0.0, %v209
  %v211 = vpop.f32.mrb[0].mxu0
  %212 = vmatprep.mubr.f32.mxu0 0.0
  %213 = vmatmul.mubr.f32.gmra.mrb[0].mxu0 %v137
  %v214 = vpop.f32.mrb[0].mxu0
  %v215 = vadd.f32 0.0, %v214
  %v216 = vpop.f32.mrb[0].mxu0
  %217 = vdwg.mxu0
  %v219 = vsel %vm132, %v116, 0
  %v222 = vsel %vm132, %v117, 0
  %224 = vmatprep.subr.mxu0 0.0
  %225 = vmatpush1.msra.mxu0 %v83
  %226 = vmatprep.subr.mxu0 0.0
  %227 = vmatpush1.msra.mxu0 %v141
  %228 = vmatprep.subr.mxu0 0.0
  %229 = vmatpush1.msra.mxu0 0.0
  %230 = vmatprep.subr.mxu0 0.0
  %231 = vmatpush1.msra.mxu0 0.0
  %232 = vmatprep.subr.mxu0 0.0
  %233 = vmatpush1.msra.mxu0 0.0
  %234 = vmatprep.subr.mxu0 0.0
  %235 = vmatpush1.msra.mxu0 0.0
  %236 = vmatprep.subr.mxu0 0.0
  %237 = vmatpush1.msra.mxu0 0.0
  %238 = vmatprep.subr.mxu0 0.0
  %239 = vmatpush1.msra.mxu0 0.0
  %240 = vmatprep.subr.mxu0 0.0
  %241 = vmatpush1.msra.mxu0 0.0
  %242 = vmatprep.subr.mxu0 0.0
  %243 = vmatpush1.msra.mxu0 0.0
  %244 = vmatprep.subr.mxu0 0.0
  %245 = vmatpush1.msra.mxu0 0.0
  %246 = vmatprep.subr.mxu0 0.0
  %247 = vmatpush1.msra.mxu0 0.0
  %248 = vmatprep.subr.mxu0 0.0
  %249 = vmatpush1.msra.mxu0 0.0
  %250 = vmatprep.subr.mxu0 0.0
  %251 = vmatpush1.msra.mxu0 0.0
  %252 = vmatprep.subr.mxu0 0.0
  %253 = vmatpush1.msra.mxu0 0.0
  %254 = vmatprep.subr.mxu0 0.0
  %255 = vmatpush1.msra.mxu0 0.0
  %256 = vmatprep.subr.mxu0 0.0
  %257 = vmatpush1.msra.mxu0 0.0
  %258 = vmatprep.subr.mxu0 0.0
  %259 = vmatpush1.msra.mxu0 0.0
  %260 = vmatprep.subr.mxu0 0.0
  %261 = vmatpush1.msra.mxu0 0.0
  %262 = vmatprep.subr.mxu0 0.0
  %263 = vmatpush1.msra.mxu0 0.0
  %264 = vmatprep.subr.mxu0 0.0
  %265 = vmatpush1.msra.mxu0 0.0
  %266 = vmatprep.subr.mxu0 0.0
  %267 = vmatpush1.msra.mxu0 0.0
  %268 = vmatprep.subr.mxu0 0.0
  %269 = vmatpush1.msra.mxu0 0.0
  %270 = vmatprep.subr.mxu0 0.0
  %271 = vmatpush1.msra.mxu0 0.0
  %272 = vmatprep.subr.mxu0 0.0
  %273 = vmatpush1.msra.mxu0 0.0
  %274 = vmatprep.subr.mxu0 0.0
  %275 = vmatpush1.msra.mxu0 0.0
  %276 = vmatprep.subr.mxu0 0.0
  %277 = vmatpush1.msra.mxu0 0.0
  %278 = vmatprep.subr.mxu0 0.0
  %279 = vmatpush1.msra.mxu0 0.0
  %280 = vmatprep.subr.mxu0 0.0
  %281 = vmatpush1.msra.mxu0 0.0
  %282 = vmatprep.subr.mxu0 0.0
  %283 = vmatpush1.msra.mxu0 0.0
  %284 = vmatprep.subr.mxu0 0.0
  %285 = vmatpush1.msra.mxu0 0.0
  %286 = vmatprep.subr.mxu0 0.0
  %287 = vmatpush1.msra.mxu0 0.0
  %288 = vmatprep.mubr.f32.mxu0 0.0
  %289 = vmatmul.mubr.f32.gmra.mrb[0].mxu0 %v219
  %v290 = vpop.f32.mrb[0].mxu0
  %v291 = vadd.f32 0.0, %v290
  %v292 = vpop.f32.mrb[0].mxu0
  %293 = vmatprep.mubr.f32.mxu0 0.0
  %294 = vmatmul.mubr.f32.gmra.mrb[0].mxu0 %v222
  %v295 = vpop.f32.mrb[0].mxu0
  %v296 = vadd.f32 0.0, %v295
  %v297 = vpop.f32.mrb[0].mxu0
  %298 = vdwg.mxu0
  %v299 = vld [vmem:[%s6] sm:$0x7]
  %v300 = vld [vmem:[%s7] sm:$0xf]
  %vm301 = vcmask 31744
  %v303 = vsel %vm301, %v210, 0
  %v306 = vsel %vm301, %v215, 0
  %vm308 = vcmask 1043456
  %v310 = vsel %vm308, %v300, 0
  %312 = vmatprep.subr.mxu0 0.0
  %313 = vmatpush1.msra.mxu0 %v310
  %314 = vmatprep.subr.mxu0 0.0
  %315 = vmatpush1.msra.mxu0 0.0
  %316 = vmatprep.subr.mxu0 0.0
  %317 = vmatpush1.msra.mxu0 0.0
  %318 = vmatprep.subr.mxu0 0.0
  %319 = vmatpush1.msra.mxu0 0.0
  %320 = vmatprep.subr.mxu0 0.0
  %321 = vmatpush1.msra.mxu0 0.0
  %322 = vmatprep.subr.mxu0 0.0
  %323 = vmatpush1.msra.mxu0 0.0
  %324 = vmatprep.subr.mxu0 0.0
  %325 = vmatpush1.msra.mxu0 0.0
  %326 = vmatprep.subr.mxu0 0.0
  %327 = vmatpush1.msra.mxu0 0.0
  %328 = vmatprep.subr.mxu0 0.0
  %329 = vmatpush1.msra.mxu0 0.0
  %330 = vmatprep.subr.mxu0 0.0
  %331 = vmatpush1.msra.mxu0 0.0
  %332 = vmatprep.subr.mxu0 0.0
  %333 = vmatpush1.msra.mxu0 0.0
  %334 = vmatprep.subr.mxu0 0.0
  %335 = vmatpush1.msra.mxu0 0.0
  %336 = vmatprep.subr.mxu0 0.0
  %337 = vmatpush1.msra.mxu0 0.0
  %338 = vmatprep.subr.mxu0 0.0
  %339 = vmatpush1.msra.mxu0 0.0
  %340 = vmatprep.subr.mxu0 0.0
  %341 = vmatpush1.msra.mxu0 0.0
  %342 = vmatprep.subr.mxu0 0.0
  %343 = vmatpush1.msra.mxu0 0.0
  %344 = vmatprep.subr.mxu0 0.0
  %345 = vmatpush1.msra.mxu0 0.0
  %346 = vmatprep.subr.mxu0 0.0
  %347 = vmatpush1.msra.mxu0 0.0
  %348 = vmatprep.subr.mxu0 0.0
  %349 = vmatpush1.msra.mxu0 0.0
  %350 = vmatprep.subr.mxu0 0.0
  %351 = vmatpush1.msra.mxu0 0.0
  %352 = vmatprep.subr.mxu0 0.0
  %353 = vmatpush1.msra.mxu0 0.0
  %354 = vmatprep.subr.mxu0 0.0
  %355 = vmatpush1.msra.mxu0 0.0
  %356 = vmatprep.subr.mxu0 0.0
  %357 = vmatpush1.msra.mxu0 0.0
  %358 = vmatprep.subr.mxu0 0.0
  %359 = vmatpush1.msra.mxu0 0.0
  %360 = vmatprep.subr.mxu0 0.0
  %361 = vmatpush1.msra.mxu0 0.0
  %362 = vmatprep.subr.mxu0 0.0
  %363 = vmatpush1.msra.mxu0 0.0
  %364 = vmatprep.subr.mxu0 0.0
  %365 = vmatpush1.msra.mxu0 0.0
  %366 = vmatprep.subr.mxu0 0.0
  %367 = vmatpush1.msra.mxu0 0.0
  %368 = vmatprep.subr.mxu0 0.0
  %369 = vmatpush1.msra.mxu0 0.0
  %370 = vmatprep.subr.mxu0 0.0
  %371 = vmatpush1.msra.mxu0 0.0
  %372 = vmatprep.subr.mxu0 0.0
  %373 = vmatpush1.msra.mxu0 0.0
  %374 = vmatprep.subr.mxu0 0.0
  %375 = vmatpush1.msra.mxu0 0.0
  %376 = vmatprep.mubr.f32.mxu0 0.0
  %377 = vmatmul.mubr.f32.gmra.mrb[0].mxu0 %v303
  %v378 = vpop.f32.mrb[0].mxu0
  %v379 = vadd.f32 0.0, %v378
  %v380 = vpop.f32.mrb[0].mxu0
  %381 = vmatprep.mubr.f32.mxu0 0.0
  %382 = vmatmul.mubr.f32.gmra.mrb[0].mxu0 %v306
  %v383 = vpop.f32.mrb[0].mxu0
  %v384 = vadd.f32 0.0, %v383
  %v385 = vpop.f32.mrb[0].mxu0
  %386 = vdwg.mxu0
  %vm387 = vcmask 23552
  %v389 = vsel %vm387, %v85, 0
  %v392 = vsel %vm387, %v86, 0
  %vm394 = vcmask 1042432
  %v396 = vsel %vm394, %v299, 0
  %398 = vmatprep.subr.mxu0 0.0
  %399 = vmatpush1.msra.mxu0 %v396
  %400 = vmatprep.subr.mxu0 0.0
  %401 = vmatpush1.msra.mxu0 0.0
  %402 = vmatprep.subr.mxu0 0.0
  %403 = vmatpush1.msra.mxu0 0.0
  %404 = vmatprep.subr.mxu0 0.0
  %405 = vmatpush1.msra.mxu0 0.0
  %406 = vmatprep.subr.mxu0 0.0
  %407 = vmatpush1.msra.mxu0 0.0
  %408 = vmatprep.subr.mxu0 0.0
  %409 = vmatpush1.msra.mxu0 0.0
  %410 = vmatprep.subr.mxu0 0.0
  %411 = vmatpush1.msra.mxu0 0.0
  %412 = vmatprep.subr.mxu0 0.0
  %413 = vmatpush1.msra.mxu0 0.0
  %414 = vmatprep.subr.mxu0 0.0
  %415 = vmatpush1.msra.mxu0 0.0
  %416 = vmatprep.subr.mxu0 0.0
  %417 = vmatpush1.msra.mxu0 0.0
  %418 = vmatprep.subr.mxu0 0.0
  %419 = vmatpush1.msra.mxu0 0.0
  %420 = vmatprep.subr.mxu0 0.0
  %421 = vmatpush1.msra.mxu0 0.0
  %422 = vmatprep.subr.mxu0 0.0
  %423 = vmatpush1.msra.mxu0 0.0
  %424 = vmatprep.subr.mxu0 0.0
  %425 = vmatpush1.msra.mxu0 0.0
  %426 = vmatprep.subr.mxu0 0.0
  %427 = vmatpush1.msra.mxu0 0.0
  %428 = vmatprep.subr.mxu0 0.0
  %429 = vmatpush1.msra.mxu0 0.0
  %430 = vmatprep.subr.mxu0 0.0
  %431 = vmatpush1.msra.mxu0 0.0
  %432 = vmatprep.subr.mxu0 0.0
  %433 = vmatpush1.msra.mxu0 0.0
  %434 = vmatprep.subr.mxu0 0.0
  %435 = vmatpush1.msra.mxu0 0.0
  %436 = vmatprep.subr.mxu0 0.0
  %437 = vmatpush1.msra.mxu0 0.0
  %438 = vmatprep.subr.mxu0 0.0
  %439 = vmatpush1.msra.mxu0 0.0
  %440 = vmatprep.subr.mxu0 0.0
  %441 = vmatpush1.msra.mxu0 0.0
  %442 = vmatprep.subr.mxu0 0.0
  %443 = vmatpush1.msra.mxu0 0.0
  %444 = vmatprep.subr.mxu0 0.0
  %445 = vmatpush1.msra.mxu0 0.0
  %446 = vmatprep.subr.mxu0 0.0
  %447 = vmatpush1.msra.mxu0 0.0
  %448 = vmatprep.subr.mxu0 0.0
  %449 = vmatpush1.msra.mxu0 0.0
  %450 = vmatprep.subr.mxu0 0.0
  %451 = vmatpush1.msra.mxu0 0.0
  %452 = vmatprep.subr.mxu0 0.0
  %453 = vmatpush1.msra.mxu0 0.0
  %454 = vmatprep.subr.mxu0 0.0
  %455 = vmatpush1.msra.mxu0 0.0
  %456 = vmatprep.subr.mxu0 0.0
  %457 = vmatpush1.msra.mxu0 0.0
  %458 = vmatprep.subr.mxu0 0.0
  %459 = vmatpush1.msra.mxu0 0.0
  %460 = vmatprep.subr.mxu0 0.0
  %461 = vmatpush1.msra.mxu0 0.0
  %462 = vmatprep.mubr.f32.mxu0 0.0
  %463 = vmatmul.mubr.f32.gmra.mrb[0].mxu0 %v389
  %v464 = vpop.f32.mrb[0].mxu0
  %v465 = vadd.f32 %v379, %v464
  %v466 = vpop.f32.mrb[0].mxu0
  %467 = vmatprep.mubr.f32.mxu0 0.0
  %468 = vmatmul.mubr.f32.gmra.mrb[0].mxu0 %v392
  %v469 = vpop.f32.mrb[0].mxu0
  %v470 = vadd.f32 %v384, %v469
  %v471 = vpop.f32.mrb[0].mxu0
  %472 = vdwg.mxu0
  %v473 = vld [vmem:[%s8] sm:$0xf]
  %v475 = vsel %vm301, %v291, 0
  %v478 = vsel %vm301, %v296, 0
  %v481 = vsel %vm308, %v473, 0
  %483 = vmatprep.subr.mxu0 0.0
  %484 = vmatpush1.msra.mxu0 %v481
  %485 = vmatprep.subr.mxu0 0.0
  %486 = vmatpush1.msra.mxu0 0.0
  %487 = vmatprep.subr.mxu0 0.0
  %488 = vmatpush1.msra.mxu0 0.0
  %489 = vmatprep.subr.mxu0 0.0
  %490 = vmatpush1.msra.mxu0 0.0
  %491 = vmatprep.subr.mxu0 0.0
  %492 = vmatpush1.msra.mxu0 0.0
  %493 = vmatprep.subr.mxu0 0.0
  %494 = vmatpush1.msra.mxu0 0.0
  %495 = vmatprep.subr.mxu0 0.0
  %496 = vmatpush1.msra.mxu0 0.0
  %497 = vmatprep.subr.mxu0 0.0
  %498 = vmatpush1.msra.mxu0 0.0
  %499 = vmatprep.subr.mxu0 0.0
  %500 = vmatpush1.msra.mxu0 0.0
  %501 = vmatprep.subr.mxu0 0.0
  %502 = vmatpush1.msra.mxu0 0.0
  %503 = vmatprep.subr.mxu0 0.0
  %504 = vmatpush1.msra.mxu0 0.0
  %505 = vmatprep.subr.mxu0 0.0
  %506 = vmatpush1.msra.mxu0 0.0
  %507 = vmatprep.subr.mxu0 0.0
  %508 = vmatpush1.msra.mxu0 0.0
  %509 = vmatprep.subr.mxu0 0.0
  %510 = vmatpush1.msra.mxu0 0.0
  %511 = vmatprep.subr.mxu0 0.0
  %512 = vmatpush1.msra.mxu0 0.0
  %513 = vmatprep.subr.mxu0 0.0
  %514 = vmatpush1.msra.mxu0 0.0
  %515 = vmatprep.subr.mxu0 0.0
  %516 = vmatpush1.msra.mxu0 0.0
  %517 = vmatprep.subr.mxu0 0.0
  %518 = vmatpush1.msra.mxu0 0.0
  %519 = vmatprep.subr.mxu0 0.0
  %520 = vmatpush1.msra.mxu0 0.0
  %521 = vmatprep.subr.mxu0 0.0
  %522 = vmatpush1.msra.mxu0 0.0
  %523 = vmatprep.subr.mxu0 0.0
  %524 = vmatpush1.msra.mxu0 0.0
  %525 = vmatprep.subr.mxu0 0.0
  %526 = vmatpush1.msra.mxu0 0.0
  %527 = vmatprep.subr.mxu0 0.0
  %528 = vmatpush1.msra.mxu0 0.0
  %529 = vmatprep.subr.mxu0 0.0
  %530 = vmatpush1.msra.mxu0 0.0
  %531 = vmatprep.subr.mxu0 0.0
  %532 = vmatpush1.msra.mxu0 0.0
  %533 = vmatprep.subr.mxu0 0.0
  %534 = vmatpush1.msra.mxu0 0.0
  %535 = vmatprep.subr.mxu0 0.0
  %536 = vmatpush1.msra.mxu0 0.0
  %537 = vmatprep.subr.mxu0 0.0
  %538 = vmatpush1.msra.mxu0 0.0
  %539 = vmatprep.subr.mxu0 0.0
  %540 = vmatpush1.msra.mxu0 0.0
  %541 = vmatprep.subr.mxu0 0.0
  %542 = vmatpush1.msra.mxu0 0.0
  %543 = vmatprep.subr.mxu0 0.0
  %544 = vmatpush1.msra.mxu0 0.0
  %545 = vmatprep.subr.mxu0 0.0
  %546 = vmatpush1.msra.mxu0 0.0
  %547 = vmatprep.mubr.f32.mxu0 0.0
  %548 = vmatmul.mubr.f32.gmra.mrb[0].mxu0 %v475
  %v549 = vpop.f32.mrb[0].mxu0
  %v550 = vadd.f32 0.0, %v549
  %v551 = vpop.f32.mrb[0].mxu0
  %552 = vmatprep.mubr.f32.mxu0 0.0
  %553 = vmatmul.mubr.f32.gmra.mrb[0].mxu0 %v478
  %v554 = vpop.f32.mrb[0].mxu0
  %v555 = vadd.f32 0.0, %v554
  %v556 = vpop.f32.mrb[0].mxu0
  %557 = vdwg.mxu0
  %v558 = vadd.f32 %v465, %v550
  %v559 = vadd.f32 %v470, %v555
  %v560 = vld [vmem:[%s9] sm:$0xff]
  %v561 = vld [vmem:[%s9 + $0x8] sm:$0xff]
  %v562 = vld [vmem:[%s9 + $0x10] sm:$0xff]
  %v563 = vld [vmem:[%s9 + $0x18] sm:$0xff]
  %v564 = vld [vmem:[%s9 + $0x20] sm:$0xff]
  %v565 = vld [vmem:[%s9 + $0x28] sm:$0xff]
  %v566 = vld [vmem:[%s9 + $0x30] sm:$0xff]
  %v567 = vld [vmem:[%s9 + $0x38] sm:$0xff]
  %vm568 = vcmask 523264
  %v570 = vsel %vm568, %v87, 0
  %572 = vmatprep.subr.mxu0 0.0
  %573 = vmatpush1.msra.mxu0 %v560
  %574 = vmatprep.subr.mxu0 0.0
  %575 = vmatpush1.msra.mxu0 %v561
  %576 = vmatprep.subr.mxu0 0.0
  %577 = vmatpush1.msra.mxu0 %v562
  %578 = vmatprep.subr.mxu0 0.0
  %579 = vmatpush1.msra.mxu0 %v563
  %580 = vmatprep.subr.mxu0 0.0
  %581 = vmatpush1.msra.mxu0 %v564
  %582 = vmatprep.subr.mxu0 0.0
  %583 = vmatpush1.msra.mxu0 %v565
  %584 = vmatprep.subr.mxu0 0.0
  %585 = vmatpush1.msra.mxu0 %v566
  %586 = vmatprep.subr.mxu0 0.0
  %587 = vmatpush1.msra.mxu0 %v567
  %588 = vmatprep.subr.mxu0 0.0
  %589 = vmatpush1.msra.mxu0 0.0
  %590 = vmatprep.subr.mxu0 0.0
  %591 = vmatpush1.msra.mxu0 0.0
  %592 = vmatprep.subr.mxu0 0.0
  %593 = vmatpush1.msra.mxu0 0.0
  %594 = vmatprep.subr.mxu0 0.0
  %595 = vmatpush1.msra.mxu0 0.0
  %596 = vmatprep.subr.mxu0 0.0
  %597 = vmatpush1.msra.mxu0 0.0
  %598 = vmatprep.subr.mxu0 0.0
  %599 = vmatpush1.msra.mxu0 0.0
  %600 = vmatprep.subr.mxu0 0.0
  %601 = vmatpush1.msra.mxu0 0.0
  %602 = vmatprep.subr.mxu0 0.0
  %603 = vmatpush1.msra.mxu0 0.0
  %604 = vmatprep.subr.mxu0 0.0
  %605 = vmatpush1.msra.mxu0 0.0
  %606 = vmatprep.subr.mxu0 0.0
  %607 = vmatpush1.msra.mxu0 0.0
  %608 = vmatprep.subr.mxu0 0.0
  %609 = vmatpush1.msra.mxu0 0.0
  %610 = vmatprep.subr.mxu0 0.0
  %611 = vmatpush1.msra.mxu0 0.0
  %612 = vmatprep.subr.mxu0 0.0
  %613 = vmatpush1.msra.mxu0 0.0
  %614 = vmatprep.subr.mxu0 0.0
  %615 = vmatpush1.msra.mxu0 0.0
  %616 = vmatprep.subr.mxu0 0.0
  %617 = vmatpush1.msra.mxu0 0.0
  %618 = vmatprep.subr.mxu0 0.0
  %619 = vmatpush1.msra.mxu0 0.0
  %620 = vmatprep.subr.mxu0 0.0
  %621 = vmatpush1.msra.mxu0 0.0
  %622 = vmatprep.subr.mxu0 0.0
  %623 = vmatpush1.msra.mxu0 0.0
  %624 = vmatprep.subr.mxu0 0.0
  %625 = vmatpush1.msra.mxu0 0.0
  %626 = vmatprep.subr.mxu0 0.0
  %627 = vmatpush1.msra.mxu0 0.0
  %628 = vmatprep.subr.mxu0 0.0
  %629 = vmatpush1.msra.mxu0 0.0
  %630 = vmatprep.subr.mxu0 0.0
  %631 = vmatpush1.msra.mxu0 0.0
  %632 = vmatprep.subr.mxu0 0.0
  %633 = vmatpush1.msra.mxu0 0.0
  %634 = vmatprep.subr.mxu0 0.0
  %635 = vmatpush1.msra.mxu0 0.0
  %636 = vmatprep.mubr.f32.mxu0 0.0
  %637 = vmatmul.mubr.f32.gmra.mrb[0].mxu0 %v570
  %v638 = vpop.f32.mrb[0].mxu0
  %v639 = vadd.f32 0.0, %v638
  %v640 = vpop.f32.mrb[0].mxu0
  %641 = vdwg.mxu0
  %v642 = vlaneseq
  %v643 = vshrl.u32 %v642, 7
  %v644 = vsub.s32 0, %v643
  %v645 = vrot.slane %v639, %v644
  %v646 = vadd.f32 %v558, %v645
  %v647 = vadd.f32 %v559, %v645
  %v648 = vld [vmem:[%s10] sm:$0x1]
  %v650 = vlaneseq
  %v651 = vshrl.u32 %v650, 7
  %v652 = vsub.s32 0, %v651
  %v653 = vrot.slane %v648, %v652
  %v655 = vadd.f32 %v646, %v653
  %v656 = vadd.f32 %v647, %v653
  %v657 = vmax.f32 %v655, 0.0
  %v658 = vmax.f32 %v656, 0.0
  %vm659 = vcmask 130048
  %v661 = vsel %vm659, %v130, 0
  %v664 = vsel %vm659, %v131, 0
  %666 = vmatprep.subr.mxu0 0.0
  %667 = vmatpush1.msra.mxu0 %v657
  %668 = vmatprep.subr.mxu0 0.0
  %669 = vmatpush1.msra.mxu0 %v658
  %670 = vmatprep.subr.mxu0 0.0
  %671 = vmatpush1.msra.mxu0 0.0
  %672 = vmatprep.subr.mxu0 0.0
  %673 = vmatpush1.msra.mxu0 0.0
  %674 = vmatprep.subr.mxu0 0.0
  %675 = vmatpush1.msra.mxu0 0.0
  %676 = vmatprep.subr.mxu0 0.0
  %677 = vmatpush1.msra.mxu0 0.0
  %678 = vmatprep.subr.mxu0 0.0
  %679 = vmatpush1.msra.mxu0 0.0
  %680 = vmatprep.subr.mxu0 0.0
  %681 = vmatpush1.msra.mxu0 0.0
  %682 = vmatprep.subr.mxu0 0.0
  %683 = vmatpush1.msra.mxu0 0.0
  %684 = vmatprep.subr.mxu0 0.0
  %685 = vmatpush1.msra.mxu0 0.0
  %686 = vmatprep.subr.mxu0 0.0
  %687 = vmatpush1.msra.mxu0 0.0
  %688 = vmatprep.subr.mxu0 0.0
  %689 = vmatpush1.msra.mxu0 0.0
  %690 = vmatprep.subr.mxu0 0.0
  %691 = vmatpush1.msra.mxu0 0.0
  %692 = vmatprep.subr.mxu0 0.0
  %693 = vmatpush1.msra.mxu0 0.0
  %694 = vmatprep.subr.mxu0 0.0
  %695 = vmatpush1.msra.mxu0 0.0
  %696 = vmatprep.subr.mxu0 0.0
  %697 = vmatpush1.msra.mxu0 0.0
  %698 = vmatprep.subr.mxu0 0.0
  %699 = vmatpush1.msra.mxu0 0.0
  %700 = vmatprep.subr.mxu0 0.0
  %701 = vmatpush1.msra.mxu0 0.0
  %702 = vmatprep.subr.mxu0 0.0
  %703 = vmatpush1.msra.mxu0 0.0
  %704 = vmatprep.subr.mxu0 0.0
  %705 = vmatpush1.msra.mxu0 0.0
  %706 = vmatprep.subr.mxu0 0.0
  %707 = vmatpush1.msra.mxu0 0.0
  %708 = vmatprep.subr.mxu0 0.0
  %709 = vmatpush1.msra.mxu0 0.0
  %710 = vmatprep.subr.mxu0 0.0
  %711 = vmatpush1.msra.mxu0 0.0
  %712 = vmatprep.subr.mxu0 0.0
  %713 = vmatpush1.msra.mxu0 0.0
  %714 = vmatprep.subr.mxu0 0.0
  %715 = vmatpush1.msra.mxu0 0.0
  %716 = vmatprep.subr.mxu0 0.0
  %717 = vmatpush1.msra.mxu0 0.0
  %718 = vmatprep.subr.mxu0 0.0
  %719 = vmatpush1.msra.mxu0 0.0
  %720 = vmatprep.subr.mxu0 0.0
  %721 = vmatpush1.msra.mxu0 0.0
  %722 = vmatprep.subr.mxu0 0.0
  %723 = vmatpush1.msra.mxu0 0.0
  %724 = vmatprep.subr.mxu0 0.0
  %725 = vmatpush1.msra.mxu0 0.0
  %726 = vmatprep.subr.mxu0 0.0
  %727 = vmatpush1.msra.mxu0 0.0
  %728 = vmatprep.subr.mxu0 0.0
  %729 = vmatpush1.msra.mxu0 0.0
  %730 = vmatprep.mubr.f32.mxu0 0.0
  %731 = vmatmul.mubr.f32.gmra.mrb[0].mxu0 %v661
  %v732 = vpop.f32.mrb[0].mxu0
  %v733 = vadd.f32 0.0, %v732
  %v734 = vpop.f32.mrb[0].mxu0
  %735 = vmatprep.mubr.f32.mxu0 0.0
  %736 = vmatmul.mubr.f32.gmra.mrb[0].mxu0 %v664
  %v737 = vpop.f32.mrb[0].mxu0
  %v738 = vadd.f32 0.0, %v737
  %v739 = vpop.f32.mrb[0].mxu0
  %740 = vdwg.mxu0
  %v741 = vld [vmem:[%s11] sm:$0xf]
  %v742 = vld [vmem:[%s12] sm:$0xff]
  %v743 = vld [vmem:[%s12 + $0x8] sm:$0xff]
  %v744 = vld [vmem:[%s12 + $0x10] sm:$0xff]
  %v745 = vld [vmem:[%s12 + $0x18] sm:$0xff]
  %v746 = vld [vmem:[%s12 + $0x20] sm:$0xff]
  %v747 = vld [vmem:[%s12 + $0x28] sm:$0xff]
  %v748 = vld [vmem:[%s12 + $0x30] sm:$0xff]
  %v749 = vld [vmem:[%s12 + $0x38] sm:$0xff]
  %v751 = vsel %vm568, %v733, 0
  %v754 = vsel %vm568, %v738, 0
  %756 = vmatprep.subr.mxu0 0.0
  %757 = vmatpush1.msra.mxu0 %v742
  %758 = vmatprep.subr.mxu0 0.0
  %759 = vmatpush1.msra.mxu0 %v743
  %760 = vmatprep.subr.mxu0 0.0
  %761 = vmatpush1.msra.mxu0 %v744
  %762 = vmatprep.subr.mxu0 0.0
  %763 = vmatpush1.msra.mxu0 %v745
  %764 = vmatprep.subr.mxu0 0.0
  %765 = vmatpush1.msra.mxu0 %v746
  %766 = vmatprep.subr.mxu0 0.0
  %767 = vmatpush1.msra.mxu0 %v747
  %768 = vmatprep.subr.mxu0 0.0
  %769 = vmatpush1.msra.mxu0 %v748
  %770 = vmatprep.subr.mxu0 0.0
  %771 = vmatpush1.msra.mxu0 %v749
  %772 = vmatprep.subr.mxu0 0.0
  %773 = vmatpush1.msra.mxu0 0.0
  %774 = vmatprep.subr.mxu0 0.0
  %775 = vmatpush1.msra.mxu0 0.0
  %776 = vmatprep.subr.mxu0 0.0
  %777 = vmatpush1.msra.mxu0 0.0
  %778 = vmatprep.subr.mxu0 0.0
  %779 = vmatpush1.msra.mxu0 0.0
  %780 = vmatprep.subr.mxu0 0.0
  %781 = vmatpush1.msra.mxu0 0.0
  %782 = vmatprep.subr.mxu0 0.0
  %783 = vmatpush1.msra.mxu0 0.0
  %784 = vmatprep.subr.mxu0 0.0
  %785 = vmatpush1.msra.mxu0 0.0
  %786 = vmatprep.subr.mxu0 0.0
  %787 = vmatpush1.msra.mxu0 0.0
  %788 = vmatprep.subr.mxu0 0.0
  %789 = vmatpush1.msra.mxu0 0.0
  %790 = vmatprep.subr.mxu0 0.0
  %791 = vmatpush1.msra.mxu0 0.0
  %792 = vmatprep.subr.mxu0 0.0
  %793 = vmatpush1.msra.mxu0 0.0
  %794 = vmatprep.subr.mxu0 0.0
  %795 = vmatpush1.msra.mxu0 0.0
  %796 = vmatprep.subr.mxu0 0.0
  %797 = vmatpush1.msra.mxu0 0.0
  %798 = vmatprep.subr.mxu0 0.0
  %799 = vmatpush1.msra.mxu0 0.0
  %800 = vmatprep.subr.mxu0 0.0
  %801 = vmatpush1.msra.mxu0 0.0
  %802 = vmatprep.subr.mxu0 0.0
  %803 = vmatpush1.msra.mxu0 0.0
  %804 = vmatprep.subr.mxu0 0.0
  %805 = vmatpush1.msra.mxu0 0.0
  %806 = vmatprep.subr.mxu0 0.0
  %807 = vmatpush1.msra.mxu0 0.0
  %808 = vmatprep.subr.mxu0 0.0
  %809 = vmatpush1.msra.mxu0 0.0
  %810 = vmatprep.subr.mxu0 0.0
  %811 = vmatpush1.msra.mxu0 0.0
  %812 = vmatprep.subr.mxu0 0.0
  %813 = vmatpush1.msra.mxu0 0.0
  %814 = vmatprep.subr.mxu0 0.0
  %815 = vmatpush1.msra.mxu0 0.0
  %816 = vmatprep.subr.mxu0 0.0
  %817 = vmatpush1.msra.mxu0 0.0
  %818 = vmatprep.subr.mxu0 0.0
  %819 = vmatpush1.msra.mxu0 0.0
  %820 = vmatprep.mubr.f32.mxu0 0.0
  %821 = vmatmul.mubr.f32.gmra.mrb[0].mxu0 %v751
  %v822 = vpop.f32.mrb[0].mxu0
  %v823 = vadd.f32 0.0, %v822
  %v824 = vpop.f32.mrb[0].mxu0
  %825 = vmatprep.mubr.f32.mxu0 0.0
  %826 = vmatmul.mubr.f32.gmra.mrb[0].mxu0 %v754
  %v827 = vpop.f32.mrb[0].mxu0
  %v828 = vadd.f32 0.0, %v827
  %v829 = vpop.f32.mrb[0].mxu0
  %830 = vdwg.mxu0
  %v832 = vsel %vm301, %v83, 0
  %v834 = vsel %vm301, %v84, 0
  %v837 = vsel %vm308, %v741, 0
  %839 = vmatprep.subr.mxu0 0.0
  %840 = vmatpush1.msra.mxu0 %v837
  %841 = vmatprep.subr.mxu0 0.0
  %842 = vmatpush1.msra.mxu0 0.0
  %843 = vmatprep.subr.mxu0 0.0
  %844 = vmatpush1.msra.mxu0 0.0
  %845 = vmatprep.subr.mxu0 0.0
  %846 = vmatpush1.msra.mxu0 0.0
  %847 = vmatprep.subr.mxu0 0.0
  %848 = vmatpush1.msra.mxu0 0.0
  %849 = vmatprep.subr.mxu0 0.0
  %850 = vmatpush1.msra.mxu0 0.0
  %851 = vmatprep.subr.mxu0 0.0
  %852 = vmatpush1.msra.mxu0 0.0
  %853 = vmatprep.subr.mxu0 0.0
  %854 = vmatpush1.msra.mxu0 0.0
  %855 = vmatprep.subr.mxu0 0.0
  %856 = vmatpush1.msra.mxu0 0.0
  %857 = vmatprep.subr.mxu0 0.0
  %858 = vmatpush1.msra.mxu0 0.0
  %859 = vmatprep.subr.mxu0 0.0
  %860 = vmatpush1.msra.mxu0 0.0
  %861 = vmatprep.subr.mxu0 0.0
  %862 = vmatpush1.msra.mxu0 0.0
  %863 = vmatprep.subr.mxu0 0.0
  %864 = vmatpush1.msra.mxu0 0.0
  %865 = vmatprep.subr.mxu0 0.0
  %866 = vmatpush1.msra.mxu0 0.0
  %867 = vmatprep.subr.mxu0 0.0
  %868 = vmatpush1.msra.mxu0 0.0
  %869 = vmatprep.subr.mxu0 0.0
  %870 = vmatpush1.msra.mxu0 0.0
  %871 = vmatprep.subr.mxu0 0.0
  %872 = vmatpush1.msra.mxu0 0.0
  %873 = vmatprep.subr.mxu0 0.0
  %874 = vmatpush1.msra.mxu0 0.0
  %875 = vmatprep.subr.mxu0 0.0
  %876 = vmatpush1.msra.mxu0 0.0
  %877 = vmatprep.subr.mxu0 0.0
  %878 = vmatpush1.msra.mxu0 0.0
  %879 = vmatprep.subr.mxu0 0.0
  %880 = vmatpush1.msra.mxu0 0.0
  %881 = vmatprep.subr.mxu0 0.0
  %882 = vmatpush1.msra.mxu0 0.0
  %883 = vmatprep.subr.mxu0 0.0
  %884 = vmatpush1.msra.mxu0 0.0
  %885 = vmatprep.subr.mxu0 0.0
  %886 = vmatpush1.msra.mxu0 0.0
  %887 = vmatprep.subr.mxu0 0.0
  %888 = vmatpush1.msra.mxu0 0.0
  %889 = vmatprep.subr.mxu0 0.0
  %890 = vmatpush1.msra.mxu0 0.0
  %891 = vmatprep.subr.mxu0 0.0
  %892 = vmatpush1.msra.mxu0 0.0
  %893 = vmatprep.subr.mxu0 0.0
  %894 = vmatpush1.msra.mxu0 0.0
  %895 = vmatprep.subr.mxu0 0.0
  %896 = vmatpush1.msra.mxu0 0.0
  %897 = vmatprep.subr.mxu0 0.0
  %898 = vmatpush1.msra.mxu0 0.0
  %899 = vmatprep.subr.mxu0 0.0
  %900 = vmatpush1.msra.mxu0 0.0
  %901 = vmatprep.subr.mxu0 0.0
  %902 = vmatpush1.msra.mxu0 0.0
  %903 = vmatprep.mubr.f32.mxu0 0.0
  %904 = vmatmul.mubr.f32.gmra.mrb[0].mxu0 %v832
  %v905 = vpop.f32.mrb[0].mxu0
  %v906 = vadd.f32 %v823, %v905
  %v907 = vpop.f32.mrb[0].mxu0
  %908 = vmatprep.mubr.f32.mxu0 0.0
  %909 = vmatmul.mubr.f32.gmra.mrb[0].mxu0 %v834
  %v910 = vpop.f32.mrb[0].mxu0
  %v911 = vadd.f32 %v828, %v910
  %v912 = vpop.f32.mrb[0].mxu0
  %913 = vdwg.mxu0
  %v914 = vld [vmem:[%s13] sm:$0xff]
  %v915 = vld [vmem:[%s13 + $0x8] sm:$0xff]
  %v916 = vld [vmem:[%s13 + $0x10] sm:$0xff]
  %v917 = vld [vmem:[%s13 + $0x18] sm:$0xff]
  %v918 = vld [vmem:[%s13 + $0x20] sm:$0xff]
  %v919 = vld [vmem:[%s13 + $0x28] sm:$0xff]
  %v920 = vld [vmem:[%s13 + $0x30] sm:$0xff]
  %v921 = vld [vmem:[%s13 + $0x38] sm:$0xff]
  %922 = vmatprep.subr.mxu0 0.0
  %923 = vmatpush1.msra.mxu0 %v914
  %924 = vmatprep.subr.mxu0 0.0
  %925 = vmatpush1.msra.mxu0 %v915
  %926 = vmatprep.subr.mxu0 0.0
  %927 = vmatpush1.msra.mxu0 %v916
  %928 = vmatprep.subr.mxu0 0.0
  %929 = vmatpush1.msra.mxu0 %v917
  %930 = vmatprep.subr.mxu0 0.0
  %931 = vmatpush1.msra.mxu0 %v918
  %932 = vmatprep.subr.mxu0 0.0
  %933 = vmatpush1.msra.mxu0 %v919
  %934 = vmatprep.subr.mxu0 0.0
  %935 = vmatpush1.msra.mxu0 %v920
  %936 = vmatprep.subr.mxu0 0.0
  %937 = vmatpush1.msra.mxu0 %v921
  %938 = vmatprep.subr.mxu0 0.0
  %939 = vmatpush1.msra.mxu0 0.0
  %940 = vmatprep.subr.mxu0 0.0
  %941 = vmatpush1.msra.mxu0 0.0
  %942 = vmatprep.subr.mxu0 0.0
  %943 = vmatpush1.msra.mxu0 0.0
  %944 = vmatprep.subr.mxu0 0.0
  %945 = vmatpush1.msra.mxu0 0.0
  %946 = vmatprep.subr.mxu0 0.0
  %947 = vmatpush1.msra.mxu0 0.0
  %948 = vmatprep.subr.mxu0 0.0
  %949 = vmatpush1.msra.mxu0 0.0
  %950 = vmatprep.subr.mxu0 0.0
  %951 = vmatpush1.msra.mxu0 0.0
  %952 = vmatprep.subr.mxu0 0.0
  %953 = vmatpush1.msra.mxu0 0.0
  %954 = vmatprep.subr.mxu0 0.0
  %955 = vmatpush1.msra.mxu0 0.0
  %956 = vmatprep.subr.mxu0 0.0
  %957 = vmatpush1.msra.mxu0 0.0
  %958 = vmatprep.subr.mxu0 0.0
  %959 = vmatpush1.msra.mxu0 0.0
  %960 = vmatprep.subr.mxu0 0.0
  %961 = vmatpush1.msra.mxu0 0.0
  %962 = vmatprep.subr.mxu0 0.0
  %963 = vmatpush1.msra.mxu0 0.0
  %964 = vmatprep.subr.mxu0 0.0
  %965 = vmatpush1.msra.mxu0 0.0
  %966 = vmatprep.subr.mxu0 0.0
  %967 = vmatpush1.msra.mxu0 0.0
  %968 = vmatprep.subr.mxu0 0.0
  %969 = vmatpush1.msra.mxu0 0.0
  %970 = vmatprep.subr.mxu0 0.0
  %971 = vmatpush1.msra.mxu0 0.0
  %972 = vmatprep.subr.mxu0 0.0
  %973 = vmatpush1.msra.mxu0 0.0
  %974 = vmatprep.subr.mxu0 0.0
  %975 = vmatpush1.msra.mxu0 0.0
  %976 = vmatprep.subr.mxu0 0.0
  %977 = vmatpush1.msra.mxu0 0.0
  %978 = vmatprep.subr.mxu0 0.0
  %979 = vmatpush1.msra.mxu0 0.0
  %980 = vmatprep.subr.mxu0 0.0
  %981 = vmatpush1.msra.mxu0 0.0
  %982 = vmatprep.subr.mxu0 0.0
  %983 = vmatpush1.msra.mxu0 0.0
  %984 = vmatprep.subr.mxu0 0.0
  %985 = vmatpush1.msra.mxu0 0.0
  %986 = vmatprep.mubr.f32.mxu0 0.0
  %987 = vmatmul.mubr.f32.gmra.mrb[0].mxu0 %v570
  %v988 = vpop.f32.mrb[0].mxu0
  %v989 = vadd.f32 0.0, %v988
  %v990 = vpop.f32.mrb[0].mxu0
  %991 = vdwg.mxu0
  %v992 = vlaneseq
  %v993 = vshrl.u32 %v992, 7
  %v994 = vsub.s32 0, %v993
  %v995 = vrot.slane %v989, %v994
  %v996 = vadd.f32 %v906, %v995
  %v997 = vadd.f32 %v911, %v995
  %v998 = vld [vmem:[%s14] sm:$0x1]
  %v1000 = vlaneseq
  %v1001 = vshrl.u32 %v1000, 7
  %v1002 = vsub.s32 0, %v1001
  %v1003 = vrot.slane %v998, %v1002
  %v1005 = vadd.f32 %v996, %v1003
  %v1006 = vadd.f32 %v997, %v1003
  %v1007 = vmax.f32 %v1005, 0.0
  %v1008 = vmax.f32 %v1006, 0.0
  %v1009 = vsel %vm568, %v1007, 0.0
  %vm1010 = vcmask 517120
  %v1011 = vsel %vm1010, %v1008, 0.0
  %v1012 = vadd.f32 %v1009, %v1011
  %v1013 = vrot.slane %v1012, 4
  %v1014 = vadd.f32 %v1012, %v1013
  %v1015 = vrot.slane %v1014, 2
  %v1016 = vadd.f32 %v1014, %v1015
  %v1017 = vrot.slane %v1016, 1
  %v1018 = vadd.f32 %v1016, %v1017
  %v1019 = vrcp.pop 10.0
  %v1020 = vmul.f32 %v1018, %v1019
  %v1021 = vsel %vm568, %v657, 0.0
  %v1022 = vsel %vm568, %v658, 0.0
  %v1023 = vadd.f32 %v1021, %v1022
  %v1024 = vrot.slane %v1023, 4
  %v1025 = vadd.f32 %v1023, %v1024
  %v1026 = vrot.slane %v1025, 2
  %v1027 = vadd.f32 %v1025, %v1026
  %v1028 = vrot.slane %v1027, 1
  %v1029 = vadd.f32 %v1027, %v1028
  %v1030 = vrcp.pop 16.0
  %v1031 = vmul.f32 %v1029, %v1030
  %v1032 = vld [vmem:[%s15] sm:$0xff]
  %v1033 = vld [vmem:[%s15 + $0x8] sm:$0xff]
  %v1034 = vld [vmem:[%s15 + $0x10] sm:$0xff]
  %v1035 = vld [vmem:[%s15 + $0x18] sm:$0xff]
  %v1036 = vld [vmem:[%s15 + $0x20] sm:$0xff]
  %v1037 = vld [vmem:[%s15 + $0x28] sm:$0xff]
  %v1038 = vld [vmem:[%s15 + $0x30] sm:$0xff]
  %v1039 = vld [vmem:[%s15 + $0x38] sm:$0xff]
  %v1040 = vld [vmem:[%s16] sm:$0xff]
  %v1041 = vld [vmem:[%s16 + $0x8] sm:$0xff]
  %v1042 = vld [vmem:[%s16 + $0x10] sm:$0xff]
  %v1043 = vld [vmem:[%s16 + $0x18] sm:$0xff]
  %v1044 = vld [vmem:[%s16 + $0x20] sm:$0xff]
  %v1045 = vld [vmem:[%s16 + $0x28] sm:$0xff]
  %v1046 = vld [vmem:[%s16 + $0x30] sm:$0xff]
  %v1047 = vld [vmem:[%s16 + $0x38] sm:$0xff]
  %v1049 = vsel %vm568, %v1031, 0
  %1051 = vmatprep.subr.mxu0 0.0
  %1052 = vmatpush1.msra.mxu0 %v1040
  %1053 = vmatprep.subr.mxu0 0.0
  %1054 = vmatpush1.msra.mxu0 %v1041
  %1055 = vmatprep.subr.mxu0 0.0
  %1056 = vmatpush1.msra.mxu0 %v1042
  %1057 = vmatprep.subr.mxu0 0.0
  %1058 = vmatpush1.msra.mxu0 %v1043
  %1059 = vmatprep.subr.mxu0 0.0
  %1060 = vmatpush1.msra.mxu0 %v1044
  %1061 = vmatprep.subr.mxu0 0.0
  %1062 = vmatpush1.msra.mxu0 %v1045
  %1063 = vmatprep.subr.mxu0 0.0
  %1064 = vmatpush1.msra.mxu0 %v1046
  %1065 = vmatprep.subr.mxu0 0.0
  %1066 = vmatpush1.msra.mxu0 %v1047
  %1067 = vmatprep.subr.mxu0 0.0
  %1068 = vmatpush1.msra.mxu0 0.0
  %1069 = vmatprep.subr.mxu0 0.0
  %1070 = vmatpush1.msra.mxu0 0.0
  %1071 = vmatprep.subr.mxu0 0.0
  %1072 = vmatpush1.msra.mxu0 0.0
  %1073 = vmatprep.subr.mxu0 0.0
  %1074 = vmatpush1.msra.mxu0 0.0
  %1075 = vmatprep.subr.mxu0 0.0
  %1076 = vmatpush1.msra.mxu0 0.0
  %1077 = vmatprep.subr.mxu0 0.0
  %1078 = vmatpush1.msra.mxu0 0.0
  %1079 = vmatprep.subr.mxu0 0.0
  %1080 = vmatpush1.msra.mxu0 0.0
  %1081 = vmatprep.subr.mxu0 0.0
  %1082 = vmatpush1.msra.mxu0 0.0
  %1083 = vmatprep.subr.mxu0 0.0
  %1084 = vmatpush1.msra.mxu0 0.0
  %1085 = vmatprep.subr.mxu0 0.0
  %1086 = vmatpush1.msra.mxu0 0.0
  %1087 = vmatprep.subr.mxu0 0.0
  %1088 = vmatpush1.msra.mxu0 0.0
  %1089 = vmatprep.subr.mxu0 0.0
  %1090 = vmatpush1.msra.mxu0 0.0
  %1091 = vmatprep.subr.mxu0 0.0
  %1092 = vmatpush1.msra.mxu0 0.0
  %1093 = vmatprep.subr.mxu0 0.0
  %1094 = vmatpush1.msra.mxu0 0.0
  %1095 = vmatprep.subr.mxu0 0.0
  %1096 = vmatpush1.msra.mxu0 0.0
  %1097 = vmatprep.subr.mxu0 0.0
  %1098 = vmatpush1.msra.mxu0 0.0
  %1099 = vmatprep.subr.mxu0 0.0
  %1100 = vmatpush1.msra.mxu0 0.0
  %1101 = vmatprep.subr.mxu0 0.0
  %1102 = vmatpush1.msra.mxu0 0.0
  %1103 = vmatprep.subr.mxu0 0.0
  %1104 = vmatpush1.msra.mxu0 0.0
  %1105 = vmatprep.subr.mxu0 0.0
  %1106 = vmatpush1.msra.mxu0 0.0
  %1107 = vmatprep.subr.mxu0 0.0
  %1108 = vmatpush1.msra.mxu0 0.0
  %1109 = vmatprep.subr.mxu0 0.0
  %1110 = vmatpush1.msra.mxu0 0.0
  %1111 = vmatprep.subr.mxu0 0.0
  %1112 = vmatpush1.msra.mxu0 0.0
  %1113 = vmatprep.subr.mxu0 0.0
  %1114 = vmatpush1.msra.mxu0 0.0
  %1115 = vmatprep.mubr.f32.mxu0 0.0
  %1116 = vmatmul.mubr.f32.gmra.mrb[0].mxu0 %v1049
  %v1117 = vpop.f32.mrb[0].mxu0
  %v1118 = vadd.f32 0.0, %v1117
  %v1119 = vpop.f32.mrb[0].mxu0
  %1120 = vdwg.mxu0
  %v1122 = vsel %vm568, %v1020, 0
  %1124 = vmatprep.subr.mxu0 0.0
  %1125 = vmatpush1.msra.mxu0 %v1032
  %1126 = vmatprep.subr.mxu0 0.0
  %1127 = vmatpush1.msra.mxu0 %v1033
  %1128 = vmatprep.subr.mxu0 0.0
  %1129 = vmatpush1.msra.mxu0 %v1034
  %1130 = vmatprep.subr.mxu0 0.0
  %1131 = vmatpush1.msra.mxu0 %v1035
  %1132 = vmatprep.subr.mxu0 0.0
  %1133 = vmatpush1.msra.mxu0 %v1036
  %1134 = vmatprep.subr.mxu0 0.0
  %1135 = vmatpush1.msra.mxu0 %v1037
  %1136 = vmatprep.subr.mxu0 0.0
  %1137 = vmatpush1.msra.mxu0 %v1038
  %1138 = vmatprep.subr.mxu0 0.0
  %1139 = vmatpush1.msra.mxu0 %v1039
  %1140 = vmatprep.subr.mxu0 0.0
  %1141 = vmatpush1.msra.mxu0 0.0
  %1142 = vmatprep.subr.mxu0 0.0
  %1143 = vmatpush1.msra.mxu0 0.0
  %1144 = vmatprep.subr.mxu0 0.0
  %1145 = vmatpush1.msra.mxu0 0.0
  %1146 = vmatprep.subr.mxu0 0.0
  %1147 = vmatpush1.msra.mxu0 0.0
  %1148 = vmatprep.subr.mxu0 0.0
  %1149 = vmatpush1.msra.mxu0 0.0
  %1150 = vmatprep.subr.mxu0 0.0
  %1151 = vmatpush1.msra.mxu0 0.0
  %1152 = vmatprep.subr.mxu0 0.0
  %1153 = vmatpush1.msra.mxu0 0.0
  %1154 = vmatprep.subr.mxu0 0.0
  %1155 = vmatpush1.msra.mxu0 0.0
  %1156 = vmatprep.subr.mxu0 0.0
  %1157 = vmatpush1.msra.mxu0 0.0
  %1158 = vmatprep.subr.mxu0 0.0
  %1159 = vmatpush1.msra.mxu0 0.0
  %1160 = vmatprep.subr.mxu0 0.0
  %1161 = vmatpush1.msra.mxu0 0.0
  %1162 = vmatprep.subr.mxu0 0.0
  %1163 = vmatpush1.msra.mxu0 0.0
  %1164 = vmatprep.subr.mxu0 0.0
  %1165 = vmatpush1.msra.mxu0 0.0
  %1166 = vmatprep.subr.mxu0 0.0
  %1167 = vmatpush1.msra.mxu0 0.0
  %1168 = vmatprep.subr.mxu0 0.0
  %1169 = vmatpush1.msra.mxu0 0.0
  %1170 = vmatprep.subr.mxu0 0.0
  %1171 = vmatpush1.msra.mxu0 0.0
  %1172 = vmatprep.subr.mxu0 0.0
  %1173 = vmatpush1.msra.mxu0 0.0
  %1174 = vmatprep.subr.mxu0 0.0
  %1175 = vmatpush1.msra.mxu0 0.0
  %1176 = vmatprep.subr.mxu0 0.0
  %1177 = vmatpush1.msra.mxu0 0.0
  %1178 = vmatprep.subr.mxu0 0.0
  %1179 = vmatpush1.msra.mxu0 0.0
  %1180 = vmatprep.subr.mxu0 0.0
  %1181 = vmatpush1.msra.mxu0 0.0
  %1182 = vmatprep.subr.mxu0 0.0
  %1183 = vmatpush1.msra.mxu0 0.0
  %1184 = vmatprep.subr.mxu0 0.0
  %1185 = vmatpush1.msra.mxu0 0.0
  %1186 = vmatprep.subr.mxu0 0.0
  %1187 = vmatpush1.msra.mxu0 0.0
  %1188 = vmatprep.mubr.f32.mxu0 0.0
  %1189 = vmatmul.mubr.f32.gmra.mrb[0].mxu0 %v1122
  %v1190 = vpop.f32.mrb[0].mxu0
  %v1191 = vadd.f32 %v1118, %v1190
  %v1192 = vpop.f32.mrb[0].mxu0
  %1193 = vdwg.mxu0
  %v1194 = vld [vmem:[%s17] sm:$0xff]
  %v1195 = vld [vmem:[%s17 + $0x8] sm:$0xff]
  %v1196 = vld [vmem:[%s17 + $0x10] sm:$0xff]
  %v1197 = vld [vmem:[%s17 + $0x18] sm:$0xff]
  %v1198 = vld [vmem:[%s17 + $0x20] sm:$0xff]
  %v1199 = vld [vmem:[%s17 + $0x28] sm:$0xff]
  %v1200 = vld [vmem:[%s17 + $0x30] sm:$0xff]
  %v1201 = vld [vmem:[%s17 + $0x38] sm:$0xff]
  %1202 = vmatprep.subr.mxu0 0.0
  %1203 = vmatpush1.msra.mxu0 %v1194
  %1204 = vmatprep.subr.mxu0 0.0
  %1205 = vmatpush1.msra.mxu0 %v1195
  %1206 = vmatprep.subr.mxu0 0.0
  %1207 = vmatpush1.msra.mxu0 %v1196
  %1208 = vmatprep.subr.mxu0 0.0
  %1209 = vmatpush1.msra.mxu0 %v1197
  %1210 = vmatprep.subr.mxu0 0.0
  %1211 = vmatpush1.msra.mxu0 %v1198
  %1212 = vmatprep.subr.mxu0 0.0
  %1213 = vmatpush1.msra.mxu0 %v1199
  %1214 = vmatprep.subr.mxu0 0.0
  %1215 = vmatpush1.msra.mxu0 %v1200
  %1216 = vmatprep.subr.mxu0 0.0
  %1217 = vmatpush1.msra.mxu0 %v1201
  %1218 = vmatprep.subr.mxu0 0.0
  %1219 = vmatpush1.msra.mxu0 0.0
  %1220 = vmatprep.subr.mxu0 0.0
  %1221 = vmatpush1.msra.mxu0 0.0
  %1222 = vmatprep.subr.mxu0 0.0
  %1223 = vmatpush1.msra.mxu0 0.0
  %1224 = vmatprep.subr.mxu0 0.0
  %1225 = vmatpush1.msra.mxu0 0.0
  %1226 = vmatprep.subr.mxu0 0.0
  %1227 = vmatpush1.msra.mxu0 0.0
  %1228 = vmatprep.subr.mxu0 0.0
  %1229 = vmatpush1.msra.mxu0 0.0
  %1230 = vmatprep.subr.mxu0 0.0
  %1231 = vmatpush1.msra.mxu0 0.0
  %1232 = vmatprep.subr.mxu0 0.0
  %1233 = vmatpush1.msra.mxu0 0.0
  %1234 = vmatprep.subr.mxu0 0.0
  %1235 = vmatpush1.msra.mxu0 0.0
  %1236 = vmatprep.subr.mxu0 0.0
  %1237 = vmatpush1.msra.mxu0 0.0
  %1238 = vmatprep.subr.mxu0 0.0
  %1239 = vmatpush1.msra.mxu0 0.0
  %1240 = vmatprep.subr.mxu0 0.0
  %1241 = vmatpush1.msra.mxu0 0.0
  %1242 = vmatprep.subr.mxu0 0.0
  %1243 = vmatpush1.msra.mxu0 0.0
  %1244 = vmatprep.subr.mxu0 0.0
  %1245 = vmatpush1.msra.mxu0 0.0
  %1246 = vmatprep.subr.mxu0 0.0
  %1247 = vmatpush1.msra.mxu0 0.0
  %1248 = vmatprep.subr.mxu0 0.0
  %1249 = vmatpush1.msra.mxu0 0.0
  %1250 = vmatprep.subr.mxu0 0.0
  %1251 = vmatpush1.msra.mxu0 0.0
  %1252 = vmatprep.subr.mxu0 0.0
  %1253 = vmatpush1.msra.mxu0 0.0
  %1254 = vmatprep.subr.mxu0 0.0
  %1255 = vmatpush1.msra.mxu0 0.0
  %1256 = vmatprep.subr.mxu0 0.0
  %1257 = vmatpush1.msra.mxu0 0.0
  %1258 = vmatprep.subr.mxu0 0.0
  %1259 = vmatpush1.msra.mxu0 0.0
  %1260 = vmatprep.subr.mxu0 0.0
  %1261 = vmatpush1.msra.mxu0 0.0
  %1262 = vmatprep.subr.mxu0 0.0
  %1263 = vmatpush1.msra.mxu0 0.0
  %1264 = vmatprep.subr.mxu0 0.0
  %1265 = vmatpush1.msra.mxu0 0.0
  %1266 = vmatprep.mubr.f32.mxu0 0.0
  %1267 = vmatmul.mubr.f32.gmra.mrb[0].mxu0 %v570
  %v1268 = vpop.f32.mrb[0].mxu0
  %v1269 = vadd.f32 0.0, %v1268
  %v1270 = vpop.f32.mrb[0].mxu0
  %1271 = vdwg.mxu0
  %v1272 = vadd.f32 %v1191, %v1269
  %v1273 = vld [vmem:[%s18] sm:$0x1]
  %v1274 = vadd.f32 %v1272, %v1273
  %v1275 = vmax.f32 %v1274, 0.0
  %v1276 = vld [vmem:[%s20] sm:$0xff]
  %v1277 = vld [vmem:[%s20 + $0x8] sm:$0xff]
  %v1278 = vld [vmem:[%s20 + $0x10] sm:$0xff]
  %v1279 = vld [vmem:[%s20 + $0x18] sm:$0xff]
  %v1280 = vld [vmem:[%s20 + $0x20] sm:$0xff]
  %v1281 = vld [vmem:[%s20 + $0x28] sm:$0xff]
  %v1282 = vld [vmem:[%s20 + $0x30] sm:$0xff]
  %v1283 = vld [vmem:[%s20 + $0x38] sm:$0xff]
  %v1285 = vsel %vm568, %v1007, 0
  %v1288 = vsel %vm568, %v1008, 0
  %1290 = vmatprep.subr.mxu0 0.0
  %1291 = vmatpush1.msra.mxu0 %v1276
  %1292 = vmatprep.subr.mxu0 0.0
  %1293 = vmatpush1.msra.mxu0 %v1277
  %1294 = vmatprep.subr.mxu0 0.0
  %1295 = vmatpush1.msra.mxu0 %v1278
  %1296 = vmatprep.subr.mxu0 0.0
  %1297 = vmatpush1.msra.mxu0 %v1279
  %1298 = vmatprep.subr.mxu0 0.0
  %1299 = vmatpush1.msra.mxu0 %v1280
  %1300 = vmatprep.subr.mxu0 0.0
  %1301 = vmatpush1.msra.mxu0 %v1281
  %1302 = vmatprep.subr.mxu0 0.0
  %1303 = vmatpush1.msra.mxu0 %v1282
  %1304 = vmatprep.subr.mxu0 0.0
  %1305 = vmatpush1.msra.mxu0 %v1283
  %1306 = vmatprep.subr.mxu0 0.0
  %1307 = vmatpush1.msra.mxu0 0.0
  %1308 = vmatprep.subr.mxu0 0.0
  %1309 = vmatpush1.msra.mxu0 0.0
  %1310 = vmatprep.subr.mxu0 0.0
  %1311 = vmatpush1.msra.mxu0 0.0
  %1312 = vmatprep.subr.mxu0 0.0
  %1313 = vmatpush1.msra.mxu0 0.0
  %1314 = vmatprep.subr.mxu0 0.0
  %1315 = vmatpush1.msra.mxu0 0.0
  %1316 = vmatprep.subr.mxu0 0.0
  %1317 = vmatpush1.msra.mxu0 0.0
  %1318 = vmatprep.subr.mxu0 0.0
  %1319 = vmatpush1.msra.mxu0 0.0
  %1320 = vmatprep.subr.mxu0 0.0
  %1321 = vmatpush1.msra.mxu0 0.0
  %1322 = vmatprep.subr.mxu0 0.0
  %1323 = vmatpush1.msra.mxu0 0.0
  %1324 = vmatprep.subr.mxu0 0.0
  %1325 = vmatpush1.msra.mxu0 0.0
  %1326 = vmatprep.subr.mxu0 0.0
  %1327 = vmatpush1.msra.mxu0 0.0
  %1328 = vmatprep.subr.mxu0 0.0
  %1329 = vmatpush1.msra.mxu0 0.0
  %1330 = vmatprep.subr.mxu0 0.0
  %1331 = vmatpush1.msra.mxu0 0.0
  %1332 = vmatprep.subr.mxu0 0.0
  %1333 = vmatpush1.msra.mxu0 0.0
  %1334 = vmatprep.subr.mxu0 0.0
  %1335 = vmatpush1.msra.mxu0 0.0
  %1336 = vmatprep.subr.mxu0 0.0
  %1337 = vmatpush1.msra.mxu0 0.0
  %1338 = vmatprep.subr.mxu0 0.0
  %1339 = vmatpush1.msra.mxu0 0.0
  %1340 = vmatprep.subr.mxu0 0.0
  %1341 = vmatpush1.msra.mxu0 0.0
  %1342 = vmatprep.subr.mxu0 0.0
  %1343 = vmatpush1.msra.mxu0 0.0
  %1344 = vmatprep.subr.mxu0 0.0
  %1345 = vmatpush1.msra.mxu0 0.0
  %1346 = vmatprep.subr.mxu0 0.0
  %1347 = vmatpush1.msra.mxu0 0.0
  %1348 = vmatprep.subr.mxu0 0.0
  %1349 = vmatpush1.msra.mxu0 0.0
  %1350 = vmatprep.subr.mxu0 0.0
  %1351 = vmatpush1.msra.mxu0 0.0
  %1352 = vmatprep.subr.mxu0 0.0
  %1353 = vmatpush1.msra.mxu0 0.0
  %1354 = vmatprep.mubr.f32.mxu0 0.0
  %1355 = vmatmul.mubr.f32.gmra.mrb[0].mxu0 %v1285
  %v1356 = vpop.f32.mrb[0].mxu0
  %v1357 = vadd.f32 0.0, %v1356
  %v1358 = vpop.f32.mrb[0].mxu0
  %1359 = vmatprep.mubr.f32.mxu0 0.0
  %1360 = vmatmul.mubr.f32.gmra.mrb[0].mxu0 %v1288
  %v1361 = vpop.f32.mrb[0].mxu0
  %v1362 = vadd.f32 0.0, %v1361
  %v1363 = vpop.f32.mrb[0].mxu0
  %1364 = vdwg.mxu0
  %v1365 = vld [vmem:[%s21] sm:$0xff]
  %v1366 = vld [vmem:[%s21 + $0x8] sm:$0xff]
  %v1367 = vld [vmem:[%s21 + $0x10] sm:$0xff]
  %v1368 = vld [vmem:[%s21 + $0x18] sm:$0xff]
  %v1369 = vld [vmem:[%s21 + $0x20] sm:$0xff]
  %v1370 = vld [vmem:[%s21 + $0x28] sm:$0xff]
  %v1371 = vld [vmem:[%s21 + $0x30] sm:$0xff]
  %v1372 = vld [vmem:[%s21 + $0x38] sm:$0xff]
  %1373 = vmatprep.subr.mxu0 0.0
  %1374 = vmatpush1.msra.mxu0 %v1365
  %1375 = vmatprep.subr.mxu0 0.0
  %1376 = vmatpush1.msra.mxu0 %v1366
  %1377 = vmatprep.subr.mxu0 0.0
  %1378 = vmatpush1.msra.mxu0 %v1367
  %1379 = vmatprep.subr.mxu0 0.0
  %1380 = vmatpush1.msra.mxu0 %v1368
  %1381 = vmatprep.subr.mxu0 0.0
  %1382 = vmatpush1.msra.mxu0 %v1369
  %1383 = vmatprep.subr.mxu0 0.0
  %1384 = vmatpush1.msra.mxu0 %v1370
  %1385 = vmatprep.subr.mxu0 0.0
  %1386 = vmatpush1.msra.mxu0 %v1371
  %1387 = vmatprep.subr.mxu0 0.0
  %1388 = vmatpush1.msra.mxu0 %v1372
  %1389 = vmatprep.subr.mxu0 0.0
  %1390 = vmatpush1.msra.mxu0 0.0
  %1391 = vmatprep.subr.mxu0 0.0
  %1392 = vmatpush1.msra.mxu0 0.0
  %1393 = vmatprep.subr.mxu0 0.0
  %1394 = vmatpush1.msra.mxu0 0.0
  %1395 = vmatprep.subr.mxu0 0.0
  %1396 = vmatpush1.msra.mxu0 0.0
  %1397 = vmatprep.subr.mxu0 0.0
  %1398 = vmatpush1.msra.mxu0 0.0
  %1399 = vmatprep.subr.mxu0 0.0
  %1400 = vmatpush1.msra.mxu0 0.0
  %1401 = vmatprep.subr.mxu0 0.0
  %1402 = vmatpush1.msra.mxu0 0.0
  %1403 = vmatprep.subr.mxu0 0.0
  %1404 = vmatpush1.msra.mxu0 0.0
  %1405 = vmatprep.subr.mxu0 0.0
  %1406 = vmatpush1.msra.mxu0 0.0
  %1407 = vmatprep.subr.mxu0 0.0
  %1408 = vmatpush1.msra.mxu0 0.0
  %1409 = vmatprep.subr.mxu0 0.0
  %1410 = vmatpush1.msra.mxu0 0.0
  %1411 = vmatprep.subr.mxu0 0.0
  %1412 = vmatpush1.msra.mxu0 0.0
  %1413 = vmatprep.subr.mxu0 0.0
  %1414 = vmatpush1.msra.mxu0 0.0
  %1415 = vmatprep.subr.mxu0 0.0
  %1416 = vmatpush1.msra.mxu0 0.0
  %1417 = vmatprep.subr.mxu0 0.0
  %1418 = vmatpush1.msra.mxu0 0.0
  %1419 = vmatprep.subr.mxu0 0.0
  %1420 = vmatpush1.msra.mxu0 0.0
  %1421 = vmatprep.subr.mxu0 0.0
  %1422 = vmatpush1.msra.mxu0 0.0
  %1423 = vmatprep.subr.mxu0 0.0
  %1424 = vmatpush1.msra.mxu0 0.0
  %1425 = vmatprep.subr.mxu0 0.0
  %1426 = vmatpush1.msra.mxu0 0.0
  %1427 = vmatprep.subr.mxu0 0.0
  %1428 = vmatpush1.msra.mxu0 0.0
  %1429 = vmatprep.subr.mxu0 0.0
  %1430 = vmatpush1.msra.mxu0 0.0
  %1431 = vmatprep.subr.mxu0 0.0
  %1432 = vmatpush1.msra.mxu0 0.0
  %1433 = vmatprep.subr.mxu0 0.0
  %1434 = vmatpush1.msra.mxu0 0.0
  %1435 = vmatprep.subr.mxu0 0.0
  %1436 = vmatpush1.msra.mxu0 0.0
  %1437 = vmatprep.mubr.f32.mxu0 0.0
  %1438 = vmatmul.mubr.f32.gmra.mrb[0].mxu0 %v1285
  %v1439 = vpop.f32.mrb[0].mxu0
  %v1440 = vadd.f32 0.0, %v1439
  %v1441 = vpop.f32.mrb[0].mxu0
  %1442 = vmatprep.mubr.f32.mxu0 0.0
  %1443 = vmatmul.mubr.f32.gmra.mrb[0].mxu0 %v1288
  %v1444 = vpop.f32.mrb[0].mxu0
  %v1445 = vadd.f32 0.0, %v1444
  %v1446 = vpop.f32.mrb[0].mxu0
  %1447 = vdwg.mxu0
  %v1448 = vld [vmem:[%s19] sm:$0xff]
  %v1449 = vld [vmem:[%s19 + $0x8] sm:$0xff]
  %v1450 = vld [vmem:[%s19 + $0x10] sm:$0xff]
  %v1451 = vld [vmem:[%s19 + $0x18] sm:$0xff]
  %v1452 = vld [vmem:[%s19 + $0x20] sm:$0xff]
  %v1453 = vld [vmem:[%s19 + $0x28] sm:$0xff]
  %v1454 = vld [vmem:[%s19 + $0x30] sm:$0xff]
  %v1455 = vld [vmem:[%s19 + $0x38] sm:$0xff]
  %v1457 = vsel %vm139, %v1362, 0
  %1459 = vmatprep.subr.mxu0 0.0
  %1460 = vmatpush1.msra.mxu0 %v1357
  %1461 = vmatprep.subr.mxu0 0.0
  %1462 = vmatpush1.msra.mxu0 %v1457
  %1463 = vmatprep.subr.mxu0 0.0
  %1464 = vmatpush1.msra.mxu0 0.0
  %1465 = vmatprep.subr.mxu0 0.0
  %1466 = vmatpush1.msra.mxu0 0.0
  %1467 = vmatprep.subr.mxu0 0.0
  %1468 = vmatpush1.msra.mxu0 0.0
  %1469 = vmatprep.subr.mxu0 0.0
  %1470 = vmatpush1.msra.mxu0 0.0
  %1471 = vmatprep.subr.mxu0 0.0
  %1472 = vmatpush1.msra.mxu0 0.0
  %1473 = vmatprep.subr.mxu0 0.0
  %1474 = vmatpush1.msra.mxu0 0.0
  %1475 = vmatprep.subr.mxu0 0.0
  %1476 = vmatpush1.msra.mxu0 0.0
  %1477 = vmatprep.subr.mxu0 0.0
  %1478 = vmatpush1.msra.mxu0 0.0
  %1479 = vmatprep.subr.mxu0 0.0
  %1480 = vmatpush1.msra.mxu0 0.0
  %1481 = vmatprep.subr.mxu0 0.0
  %1482 = vmatpush1.msra.mxu0 0.0
  %1483 = vmatprep.subr.mxu0 0.0
  %1484 = vmatpush1.msra.mxu0 0.0
  %1485 = vmatprep.subr.mxu0 0.0
  %1486 = vmatpush1.msra.mxu0 0.0
  %1487 = vmatprep.subr.mxu0 0.0
  %1488 = vmatpush1.msra.mxu0 0.0
  %1489 = vmatprep.subr.mxu0 0.0
  %1490 = vmatpush1.msra.mxu0 0.0
  %1491 = vmatprep.subr.mxu0 0.0
  %1492 = vmatpush1.msra.mxu0 0.0
  %1493 = vmatprep.subr.mxu0 0.0
  %1494 = vmatpush1.msra.mxu0 0.0
  %1495 = vmatprep.subr.mxu0 0.0
  %1496 = vmatpush1.msra.mxu0 0.0
  %1497 = vmatprep.subr.mxu0 0.0
  %1498 = vmatpush1.msra.mxu0 0.0
  %1499 = vmatprep.subr.mxu0 0.0
  %1500 = vmatpush1.msra.mxu0 0.0
  %1501 = vmatprep.subr.mxu0 0.0
  %1502 = vmatpush1.msra.mxu0 0.0
  %1503 = vmatprep.subr.mxu0 0.0
  %1504 = vmatpush1.msra.mxu0 0.0
  %1505 = vmatprep.subr.mxu0 0.0
  %1506 = vmatpush1.msra.mxu0 0.0
  %1507 = vmatprep.subr.mxu0 0.0
  %1508 = vmatpush1.msra.mxu0 0.0
  %1509 = vmatprep.subr.mxu0 0.0
  %1510 = vmatpush1.msra.mxu0 0.0
  %1511 = vmatprep.subr.mxu0 0.0
  %1512 = vmatpush1.msra.mxu0 0.0
  %1513 = vmatprep.subr.mxu0 0.0
  %1514 = vmatpush1.msra.mxu0 0.0
  %1515 = vmatprep.subr.mxu0 0.0
  %1516 = vmatpush1.msra.mxu0 0.0
  %1517 = vmatprep.subr.mxu0 0.0
  %1518 = vmatpush1.msra.mxu0 0.0
  %1519 = vmatprep.subr.mxu0 0.0
  %1520 = vmatpush1.msra.mxu0 0.0
  %1521 = vmatprep.subr.mxu0 0.0
  %1522 = vmatpush1.msra.mxu0 0.0
  %1523 = vmatprep.mubr.f32.mxu0 0.0
  %1524 = vmatmul.mubr.f32.gmra.mrb[0].mxu0 %v134
  %v1525 = vpop.f32.mrb[0].mxu0
  %v1526 = vadd.f32 0.0, %v1525
  %v1527 = vpop.f32.mrb[0].mxu0
  %1528 = vmatprep.mubr.f32.mxu0 0.0
  %1529 = vmatmul.mubr.f32.gmra.mrb[0].mxu0 %v137
  %v1530 = vpop.f32.mrb[0].mxu0
  %v1531 = vadd.f32 0.0, %v1530
  %v1532 = vpop.f32.mrb[0].mxu0
  %1533 = vdwg.mxu0
  %v1535 = vsel %vm568, %v657, 0
  %v1538 = vsel %vm568, %v658, 0
  %1540 = vmatprep.subr.mxu0 0.0
  %1541 = vmatpush1.msra.mxu0 %v1448
  %1542 = vmatprep.subr.mxu0 0.0
  %1543 = vmatpush1.msra.mxu0 %v1449
  %1544 = vmatprep.subr.mxu0 0.0
  %1545 = vmatpush1.msra.mxu0 %v1450
  %1546 = vmatprep.subr.mxu0 0.0
  %1547 = vmatpush1.msra.mxu0 %v1451
  %1548 = vmatprep.subr.mxu0 0.0
  %1549 = vmatpush1.msra.mxu0 %v1452
  %1550 = vmatprep.subr.mxu0 0.0
  %1551 = vmatpush1.msra.mxu0 %v1453
  %1552 = vmatprep.subr.mxu0 0.0
  %1553 = vmatpush1.msra.mxu0 %v1454
  %1554 = vmatprep.subr.mxu0 0.0
  %1555 = vmatpush1.msra.mxu0 %v1455
  %1556 = vmatprep.subr.mxu0 0.0
  %1557 = vmatpush1.msra.mxu0 0.0
  %1558 = vmatprep.subr.mxu0 0.0
  %1559 = vmatpush1.msra.mxu0 0.0
  %1560 = vmatprep.subr.mxu0 0.0
  %1561 = vmatpush1.msra.mxu0 0.0
  %1562 = vmatprep.subr.mxu0 0.0
  %1563 = vmatpush1.msra.mxu0 0.0
  %1564 = vmatprep.subr.mxu0 0.0
  %1565 = vmatpush1.msra.mxu0 0.0
  %1566 = vmatprep.subr.mxu0 0.0
  %1567 = vmatpush1.msra.mxu0 0.0
  %1568 = vmatprep.subr.mxu0 0.0
  %1569 = vmatpush1.msra.mxu0 0.0
  %1570 = vmatprep.subr.mxu0 0.0
  %1571 = vmatpush1.msra.mxu0 0.0
  %1572 = vmatprep.subr.mxu0 0.0
  %1573 = vmatpush1.msra.mxu0 0.0
  %1574 = vmatprep.subr.mxu0 0.0
  %1575 = vmatpush1.msra.mxu0 0.0
  %1576 = vmatprep.subr.mxu0 0.0
  %1577 = vmatpush1.msra.mxu0 0.0
  %1578 = vmatprep.subr.mxu0 0.0
  %1579 = vmatpush1.msra.mxu0 0.0
  %1580 = vmatprep.subr.mxu0 0.0
  %1581 = vmatpush1.msra.mxu0 0.0
  %1582 = vmatprep.subr.mxu0 0.0
  %1583 = vmatpush1.msra.mxu0 0.0
  %1584 = vmatprep.subr.mxu0 0.0
  %1585 = vmatpush1.msra.mxu0 0.0
  %1586 = vmatprep.subr.mxu0 0.0
  %1587 = vmatpush1.msra.mxu0 0.0
  %1588 = vmatprep.subr.mxu0 0.0
  %1589 = vmatpush1.msra.mxu0 0.0
  %1590 = vmatprep.subr.mxu0 0.0
  %1591 = vmatpush1.msra.mxu0 0.0
  %1592 = vmatprep.subr.mxu0 0.0
  %1593 = vmatpush1.msra.mxu0 0.0
  %1594 = vmatprep.subr.mxu0 0.0
  %1595 = vmatpush1.msra.mxu0 0.0
  %1596 = vmatprep.subr.mxu0 0.0
  %1597 = vmatpush1.msra.mxu0 0.0
  %1598 = vmatprep.subr.mxu0 0.0
  %1599 = vmatpush1.msra.mxu0 0.0
  %1600 = vmatprep.subr.mxu0 0.0
  %1601 = vmatpush1.msra.mxu0 0.0
  %1602 = vmatprep.subr.mxu0 0.0
  %1603 = vmatpush1.msra.mxu0 0.0
  %1604 = vmatprep.mubr.f32.mxu0 0.0
  %1605 = vmatmul.mubr.f32.gmra.mrb[0].mxu0 %v1535
  %v1606 = vpop.f32.mrb[0].mxu0
  %v1607 = vadd.f32 %v1526, %v1606
  %v1608 = vpop.f32.mrb[0].mxu0
  %1609 = vmatprep.mubr.f32.mxu0 0.0
  %1610 = vmatmul.mubr.f32.gmra.mrb[0].mxu0 %v1538
  %v1611 = vpop.f32.mrb[0].mxu0
  %v1612 = vadd.f32 %v1531, %v1611
  %v1613 = vpop.f32.mrb[0].mxu0
  %1614 = vdwg.mxu0
  %v1616 = vsel %vm139, %v1445, 0
  %1618 = vmatprep.subr.mxu0 0.0
  %1619 = vmatpush1.msra.mxu0 %v1440
  %1620 = vmatprep.subr.mxu0 0.0
  %1621 = vmatpush1.msra.mxu0 %v1616
  %1622 = vmatprep.subr.mxu0 0.0
  %1623 = vmatpush1.msra.mxu0 0.0
  %1624 = vmatprep.subr.mxu0 0.0
  %1625 = vmatpush1.msra.mxu0 0.0
  %1626 = vmatprep.subr.mxu0 0.0
  %1627 = vmatpush1.msra.mxu0 0.0
  %1628 = vmatprep.subr.mxu0 0.0
  %1629 = vmatpush1.msra.mxu0 0.0
  %1630 = vmatprep.subr.mxu0 0.0
  %1631 = vmatpush1.msra.mxu0 0.0
  %1632 = vmatprep.subr.mxu0 0.0
  %1633 = vmatpush1.msra.mxu0 0.0
  %1634 = vmatprep.subr.mxu0 0.0
  %1635 = vmatpush1.msra.mxu0 0.0
  %1636 = vmatprep.subr.mxu0 0.0
  %1637 = vmatpush1.msra.mxu0 0.0
  %1638 = vmatprep.subr.mxu0 0.0
  %1639 = vmatpush1.msra.mxu0 0.0
  %1640 = vmatprep.subr.mxu0 0.0
  %1641 = vmatpush1.msra.mxu0 0.0
  %1642 = vmatprep.subr.mxu0 0.0
  %1643 = vmatpush1.msra.mxu0 0.0
  %1644 = vmatprep.subr.mxu0 0.0
  %1645 = vmatpush1.msra.mxu0 0.0
  %1646 = vmatprep.subr.mxu0 0.0
  %1647 = vmatpush1.msra.mxu0 0.0
  %1648 = vmatprep.subr.mxu0 0.0
  %1649 = vmatpush1.msra.mxu0 0.0
  %1650 = vmatprep.subr.mxu0 0.0
  %1651 = vmatpush1.msra.mxu0 0.0
  %1652 = vmatprep.subr.mxu0 0.0
  %1653 = vmatpush1.msra.mxu0 0.0
  %1654 = vmatprep.subr.mxu0 0.0
  %1655 = vmatpush1.msra.mxu0 0.0
  %1656 = vmatprep.subr.mxu0 0.0
  %1657 = vmatpush1.msra.mxu0 0.0
  %1658 = vmatprep.subr.mxu0 0.0
  %1659 = vmatpush1.msra.mxu0 0.0
  %1660 = vmatprep.subr.mxu0 0.0
  %1661 = vmatpush1.msra.mxu0 0.0
  %1662 = vmatprep.subr.mxu0 0.0
  %1663 = vmatpush1.msra.mxu0 0.0
  %1664 = vmatprep.subr.mxu0 0.0
  %1665 = vmatpush1.msra.mxu0 0.0
  %1666 = vmatprep.subr.mxu0 0.0
  %1667 = vmatpush1.msra.mxu0 0.0
  %1668 = vmatprep.subr.mxu0 0.0
  %1669 = vmatpush1.msra.mxu0 0.0
  %1670 = vmatprep.subr.mxu0 0.0
  %1671 = vmatpush1.msra.mxu0 0.0
  %1672 = vmatprep.subr.mxu0 0.0
  %1673 = vmatpush1.msra.mxu0 0.0
  %1674 = vmatprep.subr.mxu0 0.0
  %1675 = vmatpush1.msra.mxu0 0.0
  %1676 = vmatprep.subr.mxu0 0.0
  %1677 = vmatpush1.msra.mxu0 0.0
  %1678 = vmatprep.subr.mxu0 0.0
  %1679 = vmatpush1.msra.mxu0 0.0
  %1680 = vmatprep.subr.mxu0 0.0
  %1681 = vmatpush1.msra.mxu0 0.0
  %1682 = vmatprep.mubr.f32.mxu0 0.0
  %1683 = vmatmul.mubr.f32.gmra.mrb[0].mxu0 %v219
  %v1684 = vpop.f32.mrb[0].mxu0
  %v1685 = vadd.f32 0.0, %v1684
  %v1686 = vpop.f32.mrb[0].mxu0
  %1687 = vmatprep.mubr.f32.mxu0 0.0
  %1688 = vmatmul.mubr.f32.gmra.mrb[0].mxu0 %v222
  %v1689 = vpop.f32.mrb[0].mxu0
  %v1690 = vadd.f32 0.0, %v1689
  %v1691 = vpop.f32.mrb[0].mxu0
  %1692 = vdwg.mxu0
  %v1693 = vadd.f32 %v1607, %v1685
  %v1694 = vadd.f32 %v1612, %v1690
  %v1695 = vld [vmem:[%s22] sm:$0xff]
  %v1696 = vld [vmem:[%s22 + $0x8] sm:$0xff]
  %v1697 = vld [vmem:[%s22 + $0x10] sm:$0xff]
  %v1698 = vld [vmem:[%s22 + $0x18] sm:$0xff]
  %v1699 = vld [vmem:[%s22 + $0x20] sm:$0xff]
  %v1700 = vld [vmem:[%s22 + $0x28] sm:$0xff]
  %v1701 = vld [vmem:[%s22 + $0x30] sm:$0xff]
  %v1702 = vld [vmem:[%s22 + $0x38] sm:$0xff]
  %v1704 = vsel %vm568, %v1275, 0
  %1706 = vmatprep.subr.mxu0 0.0
  %1707 = vmatpush1.msra.mxu0 %v1695
  %1708 = vmatprep.subr.mxu0 0.0
  %1709 = vmatpush1.msra.mxu0 %v1696
  %1710 = vmatprep.subr.mxu0 0.0
  %1711 = vmatpush1.msra.mxu0 %v1697
  %1712 = vmatprep.subr.mxu0 0.0
  %1713 = vmatpush1.msra.mxu0 %v1698
  %1714 = vmatprep.subr.mxu0 0.0
  %1715 = vmatpush1.msra.mxu0 %v1699
  %1716 = vmatprep.subr.mxu0 0.0
  %1717 = vmatpush1.msra.mxu0 %v1700
  %1718 = vmatprep.subr.mxu0 0.0
  %1719 = vmatpush1.msra.mxu0 %v1701
  %1720 = vmatprep.subr.mxu0 0.0
  %1721 = vmatpush1.msra.mxu0 %v1702
  %1722 = vmatprep.subr.mxu0 0.0
  %1723 = vmatpush1.msra.mxu0 0.0
  %1724 = vmatprep.subr.mxu0 0.0
  %1725 = vmatpush1.msra.mxu0 0.0
  %1726 = vmatprep.subr.mxu0 0.0
  %1727 = vmatpush1.msra.mxu0 0.0
  %1728 = vmatprep.subr.mxu0 0.0
  %1729 = vmatpush1.msra.mxu0 0.0
  %1730 = vmatprep.subr.mxu0 0.0
  %1731 = vmatpush1.msra.mxu0 0.0
  %1732 = vmatprep.subr.mxu0 0.0
  %1733 = vmatpush1.msra.mxu0 0.0
  %1734 = vmatprep.subr.mxu0 0.0
  %1735 = vmatpush1.msra.mxu0 0.0
  %1736 = vmatprep.subr.mxu0 0.0
  %1737 = vmatpush1.msra.mxu0 0.0
  %1738 = vmatprep.subr.mxu0 0.0
  %1739 = vmatpush1.msra.mxu0 0.0
  %1740 = vmatprep.subr.mxu0 0.0
  %1741 = vmatpush1.msra.mxu0 0.0
  %1742 = vmatprep.subr.mxu0 0.0
  %1743 = vmatpush1.msra.mxu0 0.0
  %1744 = vmatprep.subr.mxu0 0.0
  %1745 = vmatpush1.msra.mxu0 0.0
  %1746 = vmatprep.subr.mxu0 0.0
  %1747 = vmatpush1.msra.mxu0 0.0
  %1748 = vmatprep.subr.mxu0 0.0
  %1749 = vmatpush1.msra.mxu0 0.0
  %1750 = vmatprep.subr.mxu0 0.0
  %1751 = vmatpush1.msra.mxu0 0.0
  %1752 = vmatprep.subr.mxu0 0.0
  %1753 = vmatpush1.msra.mxu0 0.0
  %1754 = vmatprep.subr.mxu0 0.0
  %1755 = vmatpush1.msra.mxu0 0.0
  %1756 = vmatprep.subr.mxu0 0.0
  %1757 = vmatpush1.msra.mxu0 0.0
  %1758 = vmatprep.subr.mxu0 0.0
  %1759 = vmatpush1.msra.mxu0 0.0
  %1760 = vmatprep.subr.mxu0 0.0
  %1761 = vmatpush1.msra.mxu0 0.0
  %1762 = vmatprep.subr.mxu0 0.0
  %1763 = vmatpush1.msra.mxu0 0.0
  %1764 = vmatprep.subr.mxu0 0.0
  %1765 = vmatpush1.msra.mxu0 0.0
  %1766 = vmatprep.subr.mxu0 0.0
  %1767 = vmatpush1.msra.mxu0 0.0
  %1768 = vmatprep.subr.mxu0 0.0
  %1769 = vmatpush1.msra.mxu0 0.0
  %1770 = vmatprep.mubr.f32.mxu0 0.0
  %1771 = vmatmul.mubr.f32.gmra.mrb[0].mxu0 %v1704
  %v1772 = vpop.f32.mrb[0].mxu0
  %v1773 = vadd.f32 0.0, %v1772
  %v1774 = vpop.f32.mrb[0].mxu0
  %1775 = vdwg.mxu0
  %v1776 = vlaneseq
  %v1777 = vshrl.u32 %v1776, 7
  %v1778 = vsub.s32 0, %v1777
  %v1779 = vrot.slane %v1773, %v1778
  %v1780 = vadd.f32 %v1693, %v1779
  %v1781 = vadd.f32 %v1694, %v1779
  %v1782 = vld [vmem:[%s23] sm:$0x1]
  %v1784 = vlaneseq
  %v1785 = vshrl.u32 %v1784, 7
  %v1786 = vsub.s32 0, %v1785
  %v1787 = vrot.slane %v1782, %v1786
  %v1789 = vadd.f32 %v1780, %v1787
  %v1790 = vadd.f32 %v1781, %v1787
  %v1791 = vmax.f32 %v1789, 0.0
  %v1792 = vmax.f32 %v1790, 0.0
  %v1793 = vld [vmem:[%s24] sm:$0xff]
  %v1794 = vld [vmem:[%s24 + $0x8] sm:$0xff]
  %v1795 = vld [vmem:[%s24 + $0x10] sm:$0xff]
  %v1796 = vld [vmem:[%s24 + $0x18] sm:$0xff]
  %v1797 = vld [vmem:[%s24 + $0x20] sm:$0xff]
  %v1798 = vld [vmem:[%s24 + $0x28] sm:$0xff]
  %v1799 = vld [vmem:[%s24 + $0x30] sm:$0xff]
  %v1800 = vld [vmem:[%s24 + $0x38] sm:$0xff]
  %v1801 = vld [vmem:[%s25] sm:$0x1]
  %v1803 = vlaneseq
  %v1804 = vshrl.u32 %v1803, 7
  %v1805 = vsub.s32 0, %v1804
  %v1806 = vrot.slane %v1801, %v1805
  %v1809 = vsel %vm568, %v1791, 0
  %v1812 = vsel %vm568, %v1792, 0
  %1814 = vmatprep.subr.mxu0 0.0
  %1815 = vmatpush1.msra.mxu0 %v1793
  %1816 = vmatprep.subr.mxu0 0.0
  %1817 = vmatpush1.msra.mxu0 %v1794
  %1818 = vmatprep.subr.mxu0 0.0
  %1819 = vmatpush1.msra.mxu0 %v1795
  %1820 = vmatprep.subr.mxu0 0.0
  %1821 = vmatpush1.msra.mxu0 %v1796
  %1822 = vmatprep.subr.mxu0 0.0
  %1823 = vmatpush1.msra.mxu0 %v1797
  %1824 = vmatprep.subr.mxu0 0.0
  %1825 = vmatpush1.msra.mxu0 %v1798
  %1826 = vmatprep.subr.mxu0 0.0
  %1827 = vmatpush1.msra.mxu0 %v1799
  %1828 = vmatprep.subr.mxu0 0.0
  %1829 = vmatpush1.msra.mxu0 %v1800
  %1830 = vmatprep.subr.mxu0 0.0
  %1831 = vmatpush1.msra.mxu0 0.0
  %1832 = vmatprep.subr.mxu0 0.0
  %1833 = vmatpush1.msra.mxu0 0.0
  %1834 = vmatprep.subr.mxu0 0.0
  %1835 = vmatpush1.msra.mxu0 0.0
  %1836 = vmatprep.subr.mxu0 0.0
  %1837 = vmatpush1.msra.mxu0 0.0
  %1838 = vmatprep.subr.mxu0 0.0
  %1839 = vmatpush1.msra.mxu0 0.0
  %1840 = vmatprep.subr.mxu0 0.0
  %1841 = vmatpush1.msra.mxu0 0.0
  %1842 = vmatprep.subr.mxu0 0.0
  %1843 = vmatpush1.msra.mxu0 0.0
  %1844 = vmatprep.subr.mxu0 0.0
  %1845 = vmatpush1.msra.mxu0 0.0
  %1846 = vmatprep.subr.mxu0 0.0
  %1847 = vmatpush1.msra.mxu0 0.0
  %1848 = vmatprep.subr.mxu0 0.0
  %1849 = vmatpush1.msra.mxu0 0.0
  %1850 = vmatprep.subr.mxu0 0.0
  %1851 = vmatpush1.msra.mxu0 0.0
  %1852 = vmatprep.subr.mxu0 0.0
  %1853 = vmatpush1.msra.mxu0 0.0
  %1854 = vmatprep.subr.mxu0 0.0
  %1855 = vmatpush1.msra.mxu0 0.0
  %1856 = vmatprep.subr.mxu0 0.0
  %1857 = vmatpush1.msra.mxu0 0.0
  %1858 = vmatprep.subr.mxu0 0.0
  %1859 = vmatpush1.msra.mxu0 0.0
  %1860 = vmatprep.subr.mxu0 0.0
  %1861 = vmatpush1.msra.mxu0 0.0
  %1862 = vmatprep.subr.mxu0 0.0
  %1863 = vmatpush1.msra.mxu0 0.0
  %1864 = vmatprep.subr.mxu0 0.0
  %1865 = vmatpush1.msra.mxu0 0.0
  %1866 = vmatprep.subr.mxu0 0.0
  %1867 = vmatpush1.msra.mxu0 0.0
  %1868 = vmatprep.subr.mxu0 0.0
  %1869 = vmatpush1.msra.mxu0 0.0
  %1870 = vmatprep.subr.mxu0 0.0
  %1871 = vmatpush1.msra.mxu0 0.0
  %1872 = vmatprep.subr.mxu0 0.0
  %1873 = vmatpush1.msra.mxu0 0.0
  %1874 = vmatprep.subr.mxu0 0.0
  %1875 = vmatpush1.msra.mxu0 0.0
  %1876 = vmatprep.subr.mxu0 0.0
  %1877 = vmatpush1.msra.mxu0 0.0
  %1878 = vmatprep.mubr.f32.mxu0 0.0
  %1879 = vmatmul.mubr.f32.gmra.mrb[0].mxu0 %v1809
  %v1880 = vpop.f32.mrb[0].mxu0
  %v1881 = vadd.f32 %v1806, %v1880
  %v1882 = vpop.f32.mrb[0].mxu0
  %1883 = vmatprep.mubr.f32.mxu0 0.0
  %1884 = vmatmul.mubr.f32.gmra.mrb[0].mxu0 %v1812
  %v1885 = vpop.f32.mrb[0].mxu0
  %v1886 = vadd.f32 %v1806, %v1885
  %v1887 = vpop.f32.mrb[0].mxu0
  %1888 = vdwg.mxu0
  %1889 = vset.pattern.permute.xlu0 2
  %1890 = vperm.xlu0 %1889, %v291
  %v1891 = vpop.permute.xlu0 %1890
  %1893 = vset.pattern.permute.xlu0 2
  %1894 = vperm.xlu0 %1893, %v296
  %v1895 = vpop.permute.xlu0 %1894
  %v1897 = vmul.f32 %v1881, %v1891
  %v1898 = vmul.f32 %v1886, %v1895
  %1899 = vset.pattern.permute.xlu0 2
  %1900 = vperm.xlu0 %1899, %v210
  %v1901 = vpop.permute.xlu0 %1900
  %1903 = vset.pattern.permute.xlu0 2
  %1904 = vperm.xlu0 %1903, %v215
  %v1905 = vpop.permute.xlu0 %1904
  %v1907 = vsub.f32 %v1897, %v1901
  %v1908 = vsub.f32 %v1898, %v1905
  %vm1909 = vcmask 15360
  %1910 = vst.msk [vmem:[%s26] sm:$0xff] %vm1909, %v1907
  %1911 = vst.msk [vmem:[%s26 + $0x8] sm:$0xff] %vm1909, %v1908
  // Predicated region
  $region106: #{net3_forward.1} parent=0 // pred_check
    _
  $region107: #{net3_forward.1} parent=0 // pred_check_branch
    %1913 = sbr.rel (0) target = $region109
  $region108: #{net3_forward.1} parent=0 // pred_region
    _
  $region109: #{net3_forward.1} parent=0 // pred_fallthru
    _
  // Predicated region
  $region110: #{net3_forward.1} parent=0 // pred_check
    _
  $region111: #{net3_forward.1} parent=0 // pred_check_branch
    %1915 = sbr.rel (0) target = $region113
  $region112: #{net3_forward.1} parent=0 // pred_region
    _
  $region113: #{net3_forward.1} parent=0 // pred_fallthru
    _

</llo_original>
